<compile_context>
chip_gen: v6e
topology: v6e:2x2x1
jax: 0.10.0
libtpu: 0.0.40
codegen_flags: <defaults>
</compile_context>

<pallas_src>
import functools
import math

import jax
import jax.numpy as jnp
from jax.experimental import pallas as pl
from jax.experimental.pallas import tpu as pltpu

# ---------------- config (small, consistent with the module's forward) ------
VOCAB = 100
MAX_POS = 16
TYPE_VOCAB = 2
B = 2            # batch
S = 8            # sequence length
H = 32           # hidden size
N_HEADS = 2
D_HEAD = H // N_HEADS
FF = 64          # intermediate (FFN) size
N_LAYERS = 2
N_CLASSES = 5
N_PAD = 128      # lane-friendly padded classifier width (sliced to N_CLASSES in glue)
LN_EPS = 1e-12
SMALL_ROWS = 16  # rows per layer in the packed small-param block (n_heads + 7, padded)
OUT_ROWS = 8     # sublane-padded rows of the per-batch logits slab


# ---------------- in-kernel helpers ------------------------------------------
def _ln(x, g, b):
    mu = jnp.mean(x, axis=-1, keepdims=True)
    var = jnp.mean((x - mu) * (x - mu), axis=-1, keepdims=True)
    return (x - mu) * jax.lax.rsqrt(var + LN_EPS) * g + b


def _gelu(x):
    # tanh-approx GELU. TODO(synk): HF BERT uses erf GELU; tiny numerical difference.
    c = math.sqrt(2.0 / math.pi)
    return 0.5 * x * (1.0 + jnp.tanh(c * (x + 0.044715 * x * x * x)))


# ---------------- the fused Pallas kernel ------------------------------------
def _bert_fused_kernel(x_ref, mask_ref, lsm_ref, gsm_ref,
                       wqkv_ref, wo_ref, w1_ref, w2_ref, headw_ref,
                       out_ref,
                       *, n_layers, n_heads, d_head, hidden, ff_dim, n_pad):
    # Row layout of the packed per-layer small-param block (lsm_ref[l]):
    #   rows 0..n_heads-1 : per-head Q bias (already scaled by 1/sqrt(d_head))
    #   row  n_heads      : attn output bias  (bo + bv @ Wo  -- V bias folded)
    #   +1/+2             : ln1 gamma / beta
    #   +3/+4             : FFN b1 / b2
    #   +5/+6             : ln2 gamma / beta
    r_bo, r_l1g, r_l1b = n_heads, n_heads + 1, n_heads + 2
    r_b1, r_b2, r_l2g, r_l2b = n_heads + 3, n_heads + 4, n_heads + 5, n_heads + 6

    # Embedding LayerNorm (f32).
    x = _ln(x_ref[0], gsm_ref[0:1, :hidden], gsm_ref[1:2, :hidden])      # (S, H)
    mask = mask_ref[0]                                                   # (1, S) additive

    for l in range(n_layers):                                            # static unroll
        x_bf = x.astype(jnp.bfloat16)

        # ---- self-attention (per-head weights pre-split at pack time) ----
        ctx = []
        for h in range(n_heads):                                         # static unroll
            base = (l * n_heads + h) * 3
            # 1/sqrt(d_head) folded into Wq/bq at pack time; K bias dropped
            # (softmax-invariant); V bias folded into the output bias.
            q = (jnp.dot(x_bf, wqkv_ref[base + 0], preferred_element_type=jnp.float32)
                 + lsm_ref[l, h:h + 1, :d_head])
            k = jnp.dot(x_bf, wqkv_ref[base + 1], preferred_element_type=jnp.float32)
            v = jnp.dot(x_bf, wqkv_ref[base + 2], preferred_element_type=jnp.float32)

            # q @ k^T via dot_general (no materialized transpose), bf16 MXU operands.
            s = jax.lax.dot_general(q.astype(jnp.bfloat16), k.astype(jnp.bfloat16),
                                    (((1,), (1,)), ((), ())),
                                    preferred_element_type=jnp.float32)
            # No max-subtraction: scores bounded here; masked keys get -1e4 which
            # underflows exactly to 0 in exp. Every query row sees the (never padded)
            # CLS key, so the denominator is never 0.
            p = jnp.exp(s + mask)
            p = p * pl.reciprocal(jnp.sum(p, axis=-1, keepdims=True), approx=True)
            ctx.append(jnp.dot(p.astype(jnp.bfloat16), v.astype(jnp.bfloat16),
                               preferred_element_type=jnp.float32))      # (S, d_head)

        ctx = jnp.concatenate(ctx, axis=-1)                              # (S, H)
        attn = (jnp.dot(ctx.astype(jnp.bfloat16), wo_ref[l],
                        preferred_element_type=jnp.float32)
                + lsm_ref[l, r_bo:r_bo + 1, :hidden])
        x = _ln(x + attn,
                lsm_ref[l, r_l1g:r_l1g + 1, :hidden],
                lsm_ref[l, r_l1b:r_l1b + 1, :hidden])

        # ---- FFN ----
        ff = (jnp.dot(x.astype(jnp.bfloat16), w1_ref[l],
                      preferred_element_type=jnp.float32)
              + lsm_ref[l, r_b1:r_b1 + 1, :ff_dim])
        ff = _gelu(ff)
        ff = (jnp.dot(ff.astype(jnp.bfloat16), w2_ref[l],
                      preferred_element_type=jnp.float32)
              + lsm_ref[l, r_b2:r_b2 + 1, :hidden])
        x = _ln(x + ff,
                lsm_ref[l, r_l2g:r_l2g + 1, :hidden],
                lsm_ref[l, r_l2b:r_l2b + 1, :hidden])

    # ---- pooler + classifier head on the CLS row only ----
    cls = x[0:1, :]                                                      # (1, H)
    pooled = jnp.tanh(jnp.dot(cls.astype(jnp.bfloat16), headw_ref[:, :hidden],
                              preferred_element_type=jnp.float32)
                      + gsm_ref[2:3, :hidden])
    # nn.Dropout(p=0.3): identity at inference time.
    # TODO(synk): training-mode dropout would use pltpu.prng_seed / prng_random_bits.
    logits = (jnp.dot(pooled.astype(jnp.bfloat16), headw_ref[:, n_pad:2 * n_pad],
                      preferred_element_type=jnp.float32)
              + gsm_ref[3:4, :])                                         # (1, N_PAD)
    # Lane-dense (8, 128) slab per batch; glue keeps row 0 / first N_CLASSES columns.
    out_ref[...] = jnp.broadcast_to(logits, out_ref.shape)


# ---------------- deterministic synthetic parameters -------------------------
def init_params(key):
    def nrm(k, shape):
        return (0.02 * jax.random.normal(k, shape)).astype(jnp.float32)

    ks = iter(jax.random.split(key, 256))
    params = {
        "word_emb": nrm(next(ks), (VOCAB, H)),
        "pos_emb": nrm(next(ks), (MAX_POS, H)),
        "type_emb": nrm(next(ks), (TYPE_VOCAB, H)),
        "emb_ln_g": jnp.ones((H,), jnp.float32),
        "emb_ln_b": jnp.zeros((H,), jnp.float32),
        "layers": [],
        "pool_w": nrm(next(ks), (H, H)),
        "pool_b": jnp.zeros((H,), jnp.float32),
        "out_w": nrm(next(ks), (H, N_CLASSES)),     # nn.Linear(hidden, n_classes)
        "out_b": jnp.zeros((N_CLASSES,), jnp.float32),
    }
    for _ in range(N_LAYERS):
        params["layers"].append({
            "wq": nrm(next(ks), (H, H)), "bq": jnp.zeros((H,), jnp.float32),
            "wk": nrm(next(ks), (H, H)), "bk": jnp.zeros((H,), jnp.float32),
            "wv": nrm(next(ks), (H, H)), "bv": jnp.zeros((H,), jnp.float32),
            "wo": nrm(next(ks), (H, H)), "bo": jnp.zeros((H,), jnp.float32),
            "ln1_g": jnp.ones((H,), jnp.float32), "ln1_b": jnp.zeros((H,), jnp.float32),
            "w1": nrm(next(ks), (H, FF)), "b1": jnp.zeros((FF,), jnp.float32),
            "w2": nrm(next(ks), (FF, H)), "b2": jnp.zeros((H,), jnp.float32),
            "ln2_g": jnp.ones((H,), jnp.float32), "ln2_b": jnp.zeros((H,), jnp.float32),
        })
    return params


def _row128(vec):
    v = jnp.asarray(vec, jnp.float32).reshape(-1)
    return jnp.zeros((N_PAD,), jnp.float32).at[: v.shape[0]].set(v)


def pack_params(params):
    """Coalesce small params into two lane-dense blocks, pre-split heads, fold biases,
    fold 1/sqrt(d_head) into Wq/bq, cast matmul weights to bf16."""
    ls = params["layers"]
    scale = 1.0 / math.sqrt(D_HEAD)

    layer_small, wqkv = [], []
    for l in ls:
        rows = []
        for h in range(N_HEADS):
            rows.append(_row128(l["bq"][h * D_HEAD:(h + 1) * D_HEAD] * scale))
        rows.append(_row128(l["bo"] + l["bv"] @ l["wo"]))   # V bias folded through Wo
        rows += [_row128(l["ln1_g"]), _row128(l["ln1_b"]),
                 _row128(l["b1"]), _row128(l["b2"]),
                 _row128(l["ln2_g"]), _row128(l["ln2_b"])]
        while len(rows) < SMALL_ROWS:
            rows.append(jnp.zeros((N_PAD,), jnp.float32))
        layer_small.append(jnp.stack(rows))

        for h in range(N_HEADS):
            sl = slice(h * D_HEAD, (h + 1) * D_HEAD)
            wqkv += [l["wq"][:, sl] * scale, l["wk"][:, sl], l["wv"][:, sl]]

    glob_small = jnp.stack(
        [_row128(params["emb_ln_g"]), _row128(params["emb_ln_b"]),
         _row128(params["pool_b"]), _row128(params["out_b"])]
        + [jnp.zeros((N_PAD,), jnp.float32)] * 4)                  # (8, 128)

    head_w = jnp.zeros((H, 2 * N_PAD), jnp.float32)
    head_w = head_w.at[:, :H].set(params["pool_w"])
    head_w = head_w.at[:, N_PAD:N_PAD + N_CLASSES].set(params["out_w"])

    return {
        "word_emb": params["word_emb"],
        "pos_emb": params["pos_emb"],
        "type_emb": params["type_emb"],
        "layer_small": jnp.stack(layer_small),                     # (L, 16, 128) f32
        "glob_small": glob_small,                                  # (8, 128) f32
        "wqkv": jnp.stack(wqkv).astype(jnp.bfloat16),              # (L*NH*3, H, D_HEAD)
        "wo": jnp.stack([l["wo"] for l in ls]).astype(jnp.bfloat16),   # (L, H, H)
        "w1": jnp.stack([l["w1"] for l in ls]).astype(jnp.bfloat16),   # (L, H, FF)
        "w2": jnp.stack([l["w2"] for l in ls]).astype(jnp.bfloat16),   # (L, FF, H)
        "head_w": head_w.astype(jnp.bfloat16),                     # (H, 256)
    }


# ---------------- forward pass (glue = embedding gather; rest = one kernel) --
def bert_multilabel_forward(packed, input_ids, attention_mask):
    bsz, s_len = input_ids.shape
    token_type_ids = jnp.zeros_like(input_ids)

    # Embedding gathers stay as XLA glue (data-dependent gather).
    emb = (packed["word_emb"][input_ids]
           + packed["pos_emb"][jnp.arange(s_len)][None, :, :]
           + packed["type_emb"][token_type_ids])
    x = emb.astype(jnp.float32)                                    # (B, S, H)

    # Per-batch additive key-padding mask (no block-diagonal (B*S)^2 matrix).
    mask = jnp.where(attention_mask[:, None, :] > 0, 0.0, -10000.0).astype(jnp.float32)

    kern = functools.partial(_bert_fused_kernel,
                             n_layers=N_LAYERS, n_heads=N_HEADS, d_head=D_HEAD,
                             hidden=H, ff_dim=FF, n_pad=N_PAD)

    out = pl.pallas_call(
        kern,
        grid=(bsz,),
        out_shape=jax.ShapeDtypeStruct((bsz, OUT_ROWS, N_PAD), jnp.float32),
        in_specs=[
            pl.BlockSpec((1, s_len, H), lambda b: (b, 0, 0)),            # x (per batch)
            pl.BlockSpec((1, 1, s_len), lambda b: (b, 0, 0)),            # key-pad mask
            pl.BlockSpec(packed["layer_small"].shape, lambda b: (0, 0, 0)),
            pl.BlockSpec(packed["glob_small"].shape, lambda b: (0, 0)),
            pl.BlockSpec(packed["wqkv"].shape, lambda b: (0, 0, 0)),
            pl.BlockSpec(packed["wo"].shape, lambda b: (0, 0, 0)),
            pl.BlockSpec(packed["w1"].shape, lambda b: (0, 0, 0)),
            pl.BlockSpec(packed["w2"].shape, lambda b: (0, 0, 0)),
            pl.BlockSpec(packed["head_w"].shape, lambda b: (0, 0)),
        ],
        out_specs=pl.BlockSpec((1, OUT_ROWS, N_PAD), lambda b: (b, 0, 0)),
        compiler_params=pltpu.CompilerParams(dimension_semantics=("parallel",)),
    )(x, mask, packed["layer_small"], packed["glob_small"], packed["wqkv"],
      packed["wo"], packed["w1"], packed["w2"], packed["head_w"])

    # Row 0 holds the CLS logits; slice the real class columns (glue slice).
    return out[:, 0, :N_CLASSES]


# ---------------- main --------------------------------------------------------
if __name__ == "__main__":
    params = init_params(jax.random.PRNGKey(42))
    packed = pack_params(params)

    key = jax.random.PRNGKey(0)
    k_ids, _ = jax.random.split(key)
    input_ids = jax.random.randint(k_ids, (B, S), 0, VOCAB, dtype=jnp.int32)
    attention_mask = jnp.ones((B, S), dtype=jnp.int32)
    attention_mask = attention_mask.at[:, -2:].set(0)   # some padding tokens

    fwd = jax.jit(lambda ii, am: bert_multilabel_forward(packed, ii, am))
    logits = fwd(input_ids, attention_mask)
    jax.block_until_ready(logits)

    assert logits.shape == (B, N_CLASSES)
    assert logits.dtype == jnp.float32
    assert bool(jnp.all(jnp.isfinite(logits)))
    print("KERNEL_OK")
</pallas_src>

<mosaic_0001>
module attributes {stable_mosaic.version = 11 : i64} {
  func.func @_bert_fused_kernel(%arg0: i32, %arg1: memref<1x8x32xf32, #tpu.memory_space<vmem>>, %arg2: memref<1x1x8xf32, #tpu.memory_space<vmem>>, %arg3: memref<2x16x128xf32, #tpu.memory_space<vmem>>, %arg4: memref<8x128xf32, #tpu.memory_space<vmem>>, %arg5: memref<12x32x16xbf16, #tpu.memory_space<vmem>>, %arg6: memref<2x32x32xbf16, #tpu.memory_space<vmem>>, %arg7: memref<2x32x64xbf16, #tpu.memory_space<vmem>>, %arg8: memref<2x64x32xbf16, #tpu.memory_space<vmem>>, %arg9: memref<32x256xbf16, #tpu.memory_space<vmem>>, %arg10: memref<1x8x128xf32, #tpu.memory_space<vmem>>) attributes {dimension_semantics = [#tpu.dimension_semantics<parallel>], iteration_bounds = array<i64: 2>, scalar_prefetch = 0 : i64, scratch_operands = 0 : i64, tpu.core_type = #tpu.core_type<tc>, window_params = [{transform_indices = @transform_0, window_bounds = array<i64: 1, 8, 32>}, {transform_indices = @transform_1, window_bounds = array<i64: 1, 1, 8>}, {pipeline_mode = #tpu.pipeline_mode<synchronous>, transform_indices = @transform_2, window_bounds = array<i64: 2, 16, 128>}, {pipeline_mode = #tpu.pipeline_mode<synchronous>, transform_indices = @transform_3, window_bounds = array<i64: 8, 128>}, {pipeline_mode = #tpu.pipeline_mode<synchronous>, transform_indices = @transform_4, window_bounds = array<i64: 12, 32, 16>}, {pipeline_mode = #tpu.pipeline_mode<synchronous>, transform_indices = @transform_5, window_bounds = array<i64: 2, 32, 32>}, {pipeline_mode = #tpu.pipeline_mode<synchronous>, transform_indices = @transform_6, window_bounds = array<i64: 2, 32, 64>}, {pipeline_mode = #tpu.pipeline_mode<synchronous>, transform_indices = @transform_7, window_bounds = array<i64: 2, 64, 32>}, {pipeline_mode = #tpu.pipeline_mode<synchronous>, transform_indices = @transform_8, window_bounds = array<i64: 32, 256>}, {transform_indices = @transform_9, window_bounds = array<i64: 1, 8, 128>}]} {
    %c0 = arith.constant 0 : index
    %c0_0 = arith.constant 0 : index
    %c0_1 = arith.constant 0 : index
    %0 = vector.load %arg1[%c0, %c0_0, %c0_1] : memref<1x8x32xf32, #tpu.memory_space<vmem>>, vector<1x8x32xf32>
    %1 = vector.shape_cast %0 : vector<1x8x32xf32> to vector<8x32xf32>
    %c0_2 = arith.constant 0 : index
    %c0_3 = arith.constant 0 : index
    %2 = vector.load %arg4[%c0_2, %c0_3] : memref<8x128xf32, #tpu.memory_space<vmem>>, vector<1x32xf32>
    %c1 = arith.constant 1 : index
    %c0_4 = arith.constant 0 : index
    %3 = vector.load %arg4[%c1, %c0_4] : memref<8x128xf32, #tpu.memory_space<vmem>>, vector<1x32xf32>
    %cst = arith.constant dense<0.000000e+00> : vector<8xf32>
    %4 = vector.multi_reduction <add>, %1, %cst [1] : vector<8x32xf32> to vector<8xf32>
    %5 = vector.shape_cast %4 : vector<8xf32> to vector<8x1xf32>
    %cst_5 = arith.constant 3.200000e+01 : f32
    %6 = vector.broadcast %cst_5 : f32 to vector<8x1xf32>
    %7 = arith.divf %5, %6 : vector<8x1xf32>
    %8 = vector.broadcast %7 : vector<8x1xf32> to vector<8x32xf32>
    %9 = arith.subf %1, %8 : vector<8x32xf32>
    %10 = vector.broadcast %7 : vector<8x1xf32> to vector<8x32xf32>
    %11 = arith.subf %1, %10 : vector<8x32xf32>
    %12 = arith.mulf %9, %11 : vector<8x32xf32>
    %cst_6 = arith.constant dense<0.000000e+00> : vector<8xf32>
    %13 = vector.multi_reduction <add>, %12, %cst_6 [1] : vector<8x32xf32> to vector<8xf32>
    %14 = vector.shape_cast %13 : vector<8xf32> to vector<8x1xf32>
    %cst_7 = arith.constant 3.200000e+01 : f32
    %15 = vector.broadcast %cst_7 : f32 to vector<8x1xf32>
    %16 = arith.divf %14, %15 : vector<8x1xf32>
    %17 = vector.broadcast %7 : vector<8x1xf32> to vector<8x32xf32>
    %18 = arith.subf %1, %17 : vector<8x32xf32>
    %cst_8 = arith.constant 9.99999996E-13 : f32
    %19 = vector.broadcast %cst_8 : f32 to vector<8x1xf32>
    %20 = arith.addf %16, %19 : vector<8x1xf32>
    %21 = math.rsqrt %20 : vector<8x1xf32>
    %22 = vector.broadcast %21 : vector<8x1xf32> to vector<8x32xf32>
    %23 = arith.mulf %18, %22 : vector<8x32xf32>
    %24 = vector.broadcast %2 : vector<1x32xf32> to vector<8x32xf32>
    %25 = arith.mulf %23, %24 : vector<8x32xf32>
    %26 = vector.broadcast %3 : vector<1x32xf32> to vector<8x32xf32>
    %27 = arith.addf %25, %26 : vector<8x32xf32>
    %c0_9 = arith.constant 0 : index
    %c0_10 = arith.constant 0 : index
    %c0_11 = arith.constant 0 : index
    %28 = vector.load %arg2[%c0_9, %c0_10, %c0_11] : memref<1x1x8xf32, #tpu.memory_space<vmem>>, vector<1x1x8xf32>
    %29 = vector.shape_cast %28 : vector<1x1x8xf32> to vector<1x8xf32>
    %30 = arith.truncf %27 : vector<8x32xf32> to vector<8x32xbf16>
    %c0_12 = arith.constant 0 : index
    %c0_13 = arith.constant 0 : index
    %c0_14 = arith.constant 0 : index
    %31 = vector.load %arg5[%c0_12, %c0_13, %c0_14] : memref<12x32x16xbf16, #tpu.memory_space<vmem>>, vector<1x32x16xbf16>
    %32 = vector.shape_cast %31 : vector<1x32x16xbf16> to vector<32x16xbf16>
    %cst_15 = arith.constant dense<0.000000e+00> : vector<8x16xf32>
    %33 = tpu.matmul %30, %32, %cst_15 {dimension_numbers = #tpu.dot_dimension_numbers<[1], [0], [0], [1], [0, 0, 1, 1], [], []>} : vector<8x32xbf16>, vector<32x16xbf16>, vector<8x16xf32> -> vector<8x16xf32>
    %c0_16 = arith.constant 0 : index
    %c0_17 = arith.constant 0 : index
    %c0_18 = arith.constant 0 : index
    %34 = vector.load %arg3[%c0_16, %c0_17, %c0_18] : memref<2x16x128xf32, #tpu.memory_space<vmem>>, vector<1x1x16xf32>
    %35 = vector.shape_cast %34 : vector<1x1x16xf32> to vector<1x16xf32>
    %36 = vector.broadcast %35 : vector<1x16xf32> to vector<8x16xf32>
    %37 = arith.addf %33, %36 : vector<8x16xf32>
    %c1_19 = arith.constant 1 : index
    %c0_20 = arith.constant 0 : index
    %c0_21 = arith.constant 0 : index
    %38 = vector.load %arg5[%c1_19, %c0_20, %c0_21] : memref<12x32x16xbf16, #tpu.memory_space<vmem>>, vector<1x32x16xbf16>
    %39 = vector.shape_cast %38 : vector<1x32x16xbf16> to vector<32x16xbf16>
    %cst_22 = arith.constant dense<0.000000e+00> : vector<8x16xf32>
    %40 = tpu.matmul %30, %39, %cst_22 {dimension_numbers = #tpu.dot_dimension_numbers<[1], [0], [0], [1], [0, 0, 1, 1], [], []>} : vector<8x32xbf16>, vector<32x16xbf16>, vector<8x16xf32> -> vector<8x16xf32>
    %c2 = arith.constant 2 : index
    %c0_23 = arith.constant 0 : index
    %c0_24 = arith.constant 0 : index
    %41 = vector.load %arg5[%c2, %c0_23, %c0_24] : memref<12x32x16xbf16, #tpu.memory_space<vmem>>, vector<1x32x16xbf16>
    %42 = vector.shape_cast %41 : vector<1x32x16xbf16> to vector<32x16xbf16>
    %cst_25 = arith.constant dense<0.000000e+00> : vector<8x16xf32>
    %43 = tpu.matmul %30, %42, %cst_25 {dimension_numbers = #tpu.dot_dimension_numbers<[1], [0], [0], [1], [0, 0, 1, 1], [], []>} : vector<8x32xbf16>, vector<32x16xbf16>, vector<8x16xf32> -> vector<8x16xf32>
    %44 = arith.truncf %37 : vector<8x16xf32> to vector<8x16xbf16>
    %45 = arith.truncf %40 : vector<8x16xf32> to vector<8x16xbf16>
    %cst_26 = arith.constant dense<0.000000e+00> : vector<8x8xf32>
    %46 = tpu.matmul %44, %45, %cst_26 {dimension_numbers = #tpu.dot_dimension_numbers<[1], [1], [0], [0], [0, 0, 1, 0], [], []>} : vector<8x16xbf16>, vector<8x16xbf16>, vector<8x8xf32> -> vector<8x8xf32>
    %47 = vector.broadcast %29 : vector<1x8xf32> to vector<8x8xf32>
    %48 = arith.addf %46, %47 : vector<8x8xf32>
    %49 = math.exp %48 : vector<8x8xf32>
    %cst_27 = arith.constant dense<0.000000e+00> : vector<8xf32>
    %50 = vector.multi_reduction <add>, %49, %cst_27 [1] : vector<8x8xf32> to vector<8xf32>
    %51 = vector.shape_cast %50 : vector<8xf32> to vector<8x1xf32>
    %52 = tpu.reciprocal %51 {approx = true} : vector<8x1xf32> -> vector<8x1xf32>
    %53 = vector.broadcast %52 : vector<8x1xf32> to vector<8x8xf32>
    %54 = arith.mulf %49, %53 : vector<8x8xf32>
    %55 = arith.truncf %54 : vector<8x8xf32> to vector<8x8xbf16>
    %56 = arith.truncf %43 : vector<8x16xf32> to vector<8x16xbf16>
    %cst_28 = arith.constant dense<0.000000e+00> : vector<8x16xf32>
    %57 = tpu.matmul %55, %56, %cst_28 {dimension_numbers = #tpu.dot_dimension_numbers<[1], [0], [0], [1], [0, 0, 1, 1], [], []>} : vector<8x8xbf16>, vector<8x16xbf16>, vector<8x16xf32> -> vector<8x16xf32>
    %c3 = arith.constant 3 : index
    %c0_29 = arith.constant 0 : index
    %c0_30 = arith.constant 0 : index
    %58 = vector.load %arg5[%c3, %c0_29, %c0_30] : memref<12x32x16xbf16, #tpu.memory_space<vmem>>, vector<1x32x16xbf16>
    %59 = vector.shape_cast %58 : vector<1x32x16xbf16> to vector<32x16xbf16>
    %cst_31 = arith.constant dense<0.000000e+00> : vector<8x16xf32>
    %60 = tpu.matmul %30, %59, %cst_31 {dimension_numbers = #tpu.dot_dimension_numbers<[1], [0], [0], [1], [0, 0, 1, 1], [], []>} : vector<8x32xbf16>, vector<32x16xbf16>, vector<8x16xf32> -> vector<8x16xf32>
    %c0_32 = arith.constant 0 : index
    %c1_33 = arith.constant 1 : index
    %c0_34 = arith.constant 0 : index
    %61 = vector.load %arg3[%c0_32, %c1_33, %c0_34] : memref<2x16x128xf32, #tpu.memory_space<vmem>>, vector<1x1x16xf32>
    %62 = vector.shape_cast %61 : vector<1x1x16xf32> to vector<1x16xf32>
    %63 = vector.broadcast %62 : vector<1x16xf32> to vector<8x16xf32>
    %64 = arith.addf %60, %63 : vector<8x16xf32>
    %c4 = arith.constant 4 : index
    %c0_35 = arith.constant 0 : index
    %c0_36 = arith.constant 0 : index
    %65 = vector.load %arg5[%c4, %c0_35, %c0_36] : memref<12x32x16xbf16, #tpu.memory_space<vmem>>, vector<1x32x16xbf16>
    %66 = vector.shape_cast %65 : vector<1x32x16xbf16> to vector<32x16xbf16>
    %cst_37 = arith.constant dense<0.000000e+00> : vector<8x16xf32>
    %67 = tpu.matmul %30, %66, %cst_37 {dimension_numbers = #tpu.dot_dimension_numbers<[1], [0], [0], [1], [0, 0, 1, 1], [], []>} : vector<8x32xbf16>, vector<32x16xbf16>, vector<8x16xf32> -> vector<8x16xf32>
    %c5 = arith.constant 5 : index
    %c0_38 = arith.constant 0 : index
    %c0_39 = arith.constant 0 : index
    %68 = vector.load %arg5[%c5, %c0_38, %c0_39] : memref<12x32x16xbf16, #tpu.memory_space<vmem>>, vector<1x32x16xbf16>
    %69 = vector.shape_cast %68 : vector<1x32x16xbf16> to vector<32x16xbf16>
    %cst_40 = arith.constant dense<0.000000e+00> : vector<8x16xf32>
    %70 = tpu.matmul %30, %69, %cst_40 {dimension_numbers = #tpu.dot_dimension_numbers<[1], [0], [0], [1], [0, 0, 1, 1], [], []>} : vector<8x32xbf16>, vector<32x16xbf16>, vector<8x16xf32> -> vector<8x16xf32>
    %71 = arith.truncf %64 : vector<8x16xf32> to vector<8x16xbf16>
    %72 = arith.truncf %67 : vector<8x16xf32> to vector<8x16xbf16>
    %cst_41 = arith.constant dense<0.000000e+00> : vector<8x8xf32>
    %73 = tpu.matmul %71, %72, %cst_41 {dimension_numbers = #tpu.dot_dimension_numbers<[1], [1], [0], [0], [0, 0, 1, 0], [], []>} : vector<8x16xbf16>, vector<8x16xbf16>, vector<8x8xf32> -> vector<8x8xf32>
    %74 = vector.broadcast %29 : vector<1x8xf32> to vector<8x8xf32>
    %75 = arith.addf %73, %74 : vector<8x8xf32>
    %76 = math.exp %75 : vector<8x8xf32>
    %cst_42 = arith.constant dense<0.000000e+00> : vector<8xf32>
    %77 = vector.multi_reduction <add>, %76, %cst_42 [1] : vector<8x8xf32> to vector<8xf32>
    %78 = vector.shape_cast %77 : vector<8xf32> to vector<8x1xf32>
    %79 = tpu.reciprocal %78 {approx = true} : vector<8x1xf32> -> vector<8x1xf32>
    %80 = vector.broadcast %79 : vector<8x1xf32> to vector<8x8xf32>
    %81 = arith.mulf %76, %80 : vector<8x8xf32>
    %82 = arith.truncf %81 : vector<8x8xf32> to vector<8x8xbf16>
    %83 = arith.truncf %70 : vector<8x16xf32> to vector<8x16xbf16>
    %cst_43 = arith.constant dense<0.000000e+00> : vector<8x16xf32>
    %84 = tpu.matmul %82, %83, %cst_43 {dimension_numbers = #tpu.dot_dimension_numbers<[1], [0], [0], [1], [0, 0, 1, 1], [], []>} : vector<8x8xbf16>, vector<8x16xbf16>, vector<8x16xf32> -> vector<8x16xf32>
    %85 = tpu.concatenate %57, %84 in 1 : vector<8x16xf32>, vector<8x16xf32> -> vector<8x32xf32>
    %86 = arith.truncf %85 : vector<8x32xf32> to vector<8x32xbf16>
    %c0_44 = arith.constant 0 : index
    %c0_45 = arith.constant 0 : index
    %c0_46 = arith.constant 0 : index
    %87 = vector.load %arg6[%c0_44, %c0_45, %c0_46] : memref<2x32x32xbf16, #tpu.memory_space<vmem>>, vector<1x32x32xbf16>
    %88 = vector.shape_cast %87 : vector<1x32x32xbf16> to vector<32x32xbf16>
    %cst_47 = arith.constant dense<0.000000e+00> : vector<8x32xf32>
    %89 = tpu.matmul %86, %88, %cst_47 {dimension_numbers = #tpu.dot_dimension_numbers<[1], [0], [0], [1], [0, 0, 1, 1], [], []>} : vector<8x32xbf16>, vector<32x32xbf16>, vector<8x32xf32> -> vector<8x32xf32>
    %c0_48 = arith.constant 0 : index
    %c2_49 = arith.constant 2 : index
    %c0_50 = arith.constant 0 : index
    %90 = vector.load %arg3[%c0_48, %c2_49, %c0_50] : memref<2x16x128xf32, #tpu.memory_space<vmem>>, vector<1x1x32xf32>
    %91 = vector.shape_cast %90 : vector<1x1x32xf32> to vector<1x32xf32>
    %92 = vector.broadcast %91 : vector<1x32xf32> to vector<8x32xf32>
    %93 = arith.addf %89, %92 : vector<8x32xf32>
    %94 = arith.addf %27, %93 : vector<8x32xf32>
    %c0_51 = arith.constant 0 : index
    %c3_52 = arith.constant 3 : index
    %c0_53 = arith.constant 0 : index
    %95 = vector.load %arg3[%c0_51, %c3_52, %c0_53] : memref<2x16x128xf32, #tpu.memory_space<vmem>>, vector<1x1x32xf32>
    %96 = vector.shape_cast %95 : vector<1x1x32xf32> to vector<1x32xf32>
    %c0_54 = arith.constant 0 : index
    %c4_55 = arith.constant 4 : index
    %c0_56 = arith.constant 0 : index
    %97 = vector.load %arg3[%c0_54, %c4_55, %c0_56] : memref<2x16x128xf32, #tpu.memory_space<vmem>>, vector<1x1x32xf32>
    %98 = vector.shape_cast %97 : vector<1x1x32xf32> to vector<1x32xf32>
    %cst_57 = arith.constant dense<0.000000e+00> : vector<8xf32>
    %99 = vector.multi_reduction <add>, %94, %cst_57 [1] : vector<8x32xf32> to vector<8xf32>
    %100 = vector.shape_cast %99 : vector<8xf32> to vector<8x1xf32>
    %cst_58 = arith.constant 3.200000e+01 : f32
    %101 = vector.broadcast %cst_58 : f32 to vector<8x1xf32>
    %102 = arith.divf %100, %101 : vector<8x1xf32>
    %103 = vector.broadcast %102 : vector<8x1xf32> to vector<8x32xf32>
    %104 = arith.subf %94, %103 : vector<8x32xf32>
    %105 = vector.broadcast %102 : vector<8x1xf32> to vector<8x32xf32>
    %106 = arith.subf %94, %105 : vector<8x32xf32>
    %107 = arith.mulf %104, %106 : vector<8x32xf32>
    %cst_59 = arith.constant dense<0.000000e+00> : vector<8xf32>
    %108 = vector.multi_reduction <add>, %107, %cst_59 [1] : vector<8x32xf32> to vector<8xf32>
    %109 = vector.shape_cast %108 : vector<8xf32> to vector<8x1xf32>
    %cst_60 = arith.constant 3.200000e+01 : f32
    %110 = vector.broadcast %cst_60 : f32 to vector<8x1xf32>
    %111 = arith.divf %109, %110 : vector<8x1xf32>
    %112 = vector.broadcast %102 : vector<8x1xf32> to vector<8x32xf32>
    %113 = arith.subf %94, %112 : vector<8x32xf32>
    %cst_61 = arith.constant 9.99999996E-13 : f32
    %114 = vector.broadcast %cst_61 : f32 to vector<8x1xf32>
    %115 = arith.addf %111, %114 : vector<8x1xf32>
    %116 = math.rsqrt %115 : vector<8x1xf32>
    %117 = vector.broadcast %116 : vector<8x1xf32> to vector<8x32xf32>
    %118 = arith.mulf %113, %117 : vector<8x32xf32>
    %119 = vector.broadcast %96 : vector<1x32xf32> to vector<8x32xf32>
    %120 = arith.mulf %118, %119 : vector<8x32xf32>
    %121 = vector.broadcast %98 : vector<1x32xf32> to vector<8x32xf32>
    %122 = arith.addf %120, %121 : vector<8x32xf32>
    %123 = arith.truncf %122 : vector<8x32xf32> to vector<8x32xbf16>
    %c0_62 = arith.constant 0 : index
    %c0_63 = arith.constant 0 : index
    %c0_64 = arith.constant 0 : index
    %124 = vector.load %arg7[%c0_62, %c0_63, %c0_64] : memref<2x32x64xbf16, #tpu.memory_space<vmem>>, vector<1x32x64xbf16>
    %125 = vector.shape_cast %124 : vector<1x32x64xbf16> to vector<32x64xbf16>
    %cst_65 = arith.constant dense<0.000000e+00> : vector<8x64xf32>
    %126 = tpu.matmul %123, %125, %cst_65 {dimension_numbers = #tpu.dot_dimension_numbers<[1], [0], [0], [1], [0, 0, 1, 1], [], []>} : vector<8x32xbf16>, vector<32x64xbf16>, vector<8x64xf32> -> vector<8x64xf32>
    %c0_66 = arith.constant 0 : index
    %c5_67 = arith.constant 5 : index
    %c0_68 = arith.constant 0 : index
    %127 = vector.load %arg3[%c0_66, %c5_67, %c0_68] : memref<2x16x128xf32, #tpu.memory_space<vmem>>, vector<1x1x64xf32>
    %128 = vector.shape_cast %127 : vector<1x1x64xf32> to vector<1x64xf32>
    %129 = vector.broadcast %128 : vector<1x64xf32> to vector<8x64xf32>
    %130 = arith.addf %126, %129 : vector<8x64xf32>
    %cst_69 = arith.constant 5.000000e-01 : f32
    %131 = vector.broadcast %cst_69 : f32 to vector<8x64xf32>
    %132 = arith.mulf %131, %130 : vector<8x64xf32>
    %cst_70 = arith.constant 4.471500e-02 : f32
    %133 = vector.broadcast %cst_70 : f32 to vector<8x64xf32>
    %134 = arith.mulf %133, %130 : vector<8x64xf32>
    %135 = arith.mulf %134, %130 : vector<8x64xf32>
    %136 = arith.mulf %135, %130 : vector<8x64xf32>
    %137 = arith.addf %130, %136 : vector<8x64xf32>
    %cst_71 = arith.constant 0.797884583 : f32
    %138 = vector.broadcast %cst_71 : f32 to vector<8x64xf32>
    %139 = arith.mulf %138, %137 : vector<8x64xf32>
    %140 = math.tanh %139 : vector<8x64xf32>
    %cst_72 = arith.constant 1.000000e+00 : f32
    %141 = vector.broadcast %cst_72 : f32 to vector<8x64xf32>
    %142 = arith.addf %141, %140 : vector<8x64xf32>
    %143 = arith.mulf %132, %142 : vector<8x64xf32>
    %144 = arith.truncf %143 : vector<8x64xf32> to vector<8x64xbf16>
    %c0_73 = arith.constant 0 : index
    %c0_74 = arith.constant 0 : index
    %c0_75 = arith.constant 0 : index
    %145 = vector.load %arg8[%c0_73, %c0_74, %c0_75] : memref<2x64x32xbf16, #tpu.memory_space<vmem>>, vector<1x64x32xbf16>
    %146 = vector.shape_cast %145 : vector<1x64x32xbf16> to vector<64x32xbf16>
    %cst_76 = arith.constant dense<0.000000e+00> : vector<8x32xf32>
    %147 = tpu.matmul %144, %146, %cst_76 {dimension_numbers = #tpu.dot_dimension_numbers<[1], [0], [0], [1], [0, 0, 1, 1], [], []>} : vector<8x64xbf16>, vector<64x32xbf16>, vector<8x32xf32> -> vector<8x32xf32>
    %c0_77 = arith.constant 0 : index
    %c6 = arith.constant 6 : index
    %c0_78 = arith.constant 0 : index
    %148 = vector.load %arg3[%c0_77, %c6, %c0_78] : memref<2x16x128xf32, #tpu.memory_space<vmem>>, vector<1x1x32xf32>
    %149 = vector.shape_cast %148 : vector<1x1x32xf32> to vector<1x32xf32>
    %150 = vector.broadcast %149 : vector<1x32xf32> to vector<8x32xf32>
    %151 = arith.addf %147, %150 : vector<8x32xf32>
    %152 = arith.addf %122, %151 : vector<8x32xf32>
    %c0_79 = arith.constant 0 : index
    %c7 = arith.constant 7 : index
    %c0_80 = arith.constant 0 : index
    %153 = vector.load %arg3[%c0_79, %c7, %c0_80] : memref<2x16x128xf32, #tpu.memory_space<vmem>>, vector<1x1x32xf32>
    %154 = vector.shape_cast %153 : vector<1x1x32xf32> to vector<1x32xf32>
    %c0_81 = arith.constant 0 : index
    %c8 = arith.constant 8 : index
    %c0_82 = arith.constant 0 : index
    %155 = vector.load %arg3[%c0_81, %c8, %c0_82] : memref<2x16x128xf32, #tpu.memory_space<vmem>>, vector<1x1x32xf32>
    %156 = vector.shape_cast %155 : vector<1x1x32xf32> to vector<1x32xf32>
    %cst_83 = arith.constant dense<0.000000e+00> : vector<8xf32>
    %157 = vector.multi_reduction <add>, %152, %cst_83 [1] : vector<8x32xf32> to vector<8xf32>
    %158 = vector.shape_cast %157 : vector<8xf32> to vector<8x1xf32>
    %cst_84 = arith.constant 3.200000e+01 : f32
    %159 = vector.broadcast %cst_84 : f32 to vector<8x1xf32>
    %160 = arith.divf %158, %159 : vector<8x1xf32>
    %161 = vector.broadcast %160 : vector<8x1xf32> to vector<8x32xf32>
    %162 = arith.subf %152, %161 : vector<8x32xf32>
    %163 = vector.broadcast %160 : vector<8x1xf32> to vector<8x32xf32>
    %164 = arith.subf %152, %163 : vector<8x32xf32>
    %165 = arith.mulf %162, %164 : vector<8x32xf32>
    %cst_85 = arith.constant dense<0.000000e+00> : vector<8xf32>
    %166 = vector.multi_reduction <add>, %165, %cst_85 [1] : vector<8x32xf32> to vector<8xf32>
    %167 = vector.shape_cast %166 : vector<8xf32> to vector<8x1xf32>
    %cst_86 = arith.constant 3.200000e+01 : f32
    %168 = vector.broadcast %cst_86 : f32 to vector<8x1xf32>
    %169 = arith.divf %167, %168 : vector<8x1xf32>
    %170 = vector.broadcast %160 : vector<8x1xf32> to vector<8x32xf32>
    %171 = arith.subf %152, %170 : vector<8x32xf32>
    %cst_87 = arith.constant 9.99999996E-13 : f32
    %172 = vector.broadcast %cst_87 : f32 to vector<8x1xf32>
    %173 = arith.addf %169, %172 : vector<8x1xf32>
    %174 = math.rsqrt %173 : vector<8x1xf32>
    %175 = vector.broadcast %174 : vector<8x1xf32> to vector<8x32xf32>
    %176 = arith.mulf %171, %175 : vector<8x32xf32>
    %177 = vector.broadcast %154 : vector<1x32xf32> to vector<8x32xf32>
    %178 = arith.mulf %176, %177 : vector<8x32xf32>
    %179 = vector.broadcast %156 : vector<1x32xf32> to vector<8x32xf32>
    %180 = arith.addf %178, %179 : vector<8x32xf32>
    %181 = arith.truncf %180 : vector<8x32xf32> to vector<8x32xbf16>
    %c6_88 = arith.constant 6 : index
    %c0_89 = arith.constant 0 : index
    %c0_90 = arith.constant 0 : index
    %182 = vector.load %arg5[%c6_88, %c0_89, %c0_90] : memref<12x32x16xbf16, #tpu.memory_space<vmem>>, vector<1x32x16xbf16>
    %183 = vector.shape_cast %182 : vector<1x32x16xbf16> to vector<32x16xbf16>
    %cst_91 = arith.constant dense<0.000000e+00> : vector<8x16xf32>
    %184 = tpu.matmul %181, %183, %cst_91 {dimension_numbers = #tpu.dot_dimension_numbers<[1], [0], [0], [1], [0, 0, 1, 1], [], []>} : vector<8x32xbf16>, vector<32x16xbf16>, vector<8x16xf32> -> vector<8x16xf32>
    %c1_92 = arith.constant 1 : index
    %c0_93 = arith.constant 0 : index
    %c0_94 = arith.constant 0 : index
    %185 = vector.load %arg3[%c1_92, %c0_93, %c0_94] : memref<2x16x128xf32, #tpu.memory_space<vmem>>, vector<1x1x16xf32>
    %186 = vector.shape_cast %185 : vector<1x1x16xf32> to vector<1x16xf32>
    %187 = vector.broadcast %186 : vector<1x16xf32> to vector<8x16xf32>
    %188 = arith.addf %184, %187 : vector<8x16xf32>
    %c7_95 = arith.constant 7 : index
    %c0_96 = arith.constant 0 : index
    %c0_97 = arith.constant 0 : index
    %189 = vector.load %arg5[%c7_95, %c0_96, %c0_97] : memref<12x32x16xbf16, #tpu.memory_space<vmem>>, vector<1x32x16xbf16>
    %190 = vector.shape_cast %189 : vector<1x32x16xbf16> to vector<32x16xbf16>
    %cst_98 = arith.constant dense<0.000000e+00> : vector<8x16xf32>
    %191 = tpu.matmul %181, %190, %cst_98 {dimension_numbers = #tpu.dot_dimension_numbers<[1], [0], [0], [1], [0, 0, 1, 1], [], []>} : vector<8x32xbf16>, vector<32x16xbf16>, vector<8x16xf32> -> vector<8x16xf32>
    %c8_99 = arith.constant 8 : index
    %c0_100 = arith.constant 0 : index
    %c0_101 = arith.constant 0 : index
    %192 = vector.load %arg5[%c8_99, %c0_100, %c0_101] : memref<12x32x16xbf16, #tpu.memory_space<vmem>>, vector<1x32x16xbf16>
    %193 = vector.shape_cast %192 : vector<1x32x16xbf16> to vector<32x16xbf16>
    %cst_102 = arith.constant dense<0.000000e+00> : vector<8x16xf32>
    %194 = tpu.matmul %181, %193, %cst_102 {dimension_numbers = #tpu.dot_dimension_numbers<[1], [0], [0], [1], [0, 0, 1, 1], [], []>} : vector<8x32xbf16>, vector<32x16xbf16>, vector<8x16xf32> -> vector<8x16xf32>
    %195 = arith.truncf %188 : vector<8x16xf32> to vector<8x16xbf16>
    %196 = arith.truncf %191 : vector<8x16xf32> to vector<8x16xbf16>
    %cst_103 = arith.constant dense<0.000000e+00> : vector<8x8xf32>
    %197 = tpu.matmul %195, %196, %cst_103 {dimension_numbers = #tpu.dot_dimension_numbers<[1], [1], [0], [0], [0, 0, 1, 0], [], []>} : vector<8x16xbf16>, vector<8x16xbf16>, vector<8x8xf32> -> vector<8x8xf32>
    %198 = vector.broadcast %29 : vector<1x8xf32> to vector<8x8xf32>
    %199 = arith.addf %197, %198 : vector<8x8xf32>
    %200 = math.exp %199 : vector<8x8xf32>
    %cst_104 = arith.constant dense<0.000000e+00> : vector<8xf32>
    %201 = vector.multi_reduction <add>, %200, %cst_104 [1] : vector<8x8xf32> to vector<8xf32>
    %202 = vector.shape_cast %201 : vector<8xf32> to vector<8x1xf32>
    %203 = tpu.reciprocal %202 {approx = true} : vector<8x1xf32> -> vector<8x1xf32>
    %204 = vector.broadcast %203 : vector<8x1xf32> to vector<8x8xf32>
    %205 = arith.mulf %200, %204 : vector<8x8xf32>
    %206 = arith.truncf %205 : vector<8x8xf32> to vector<8x8xbf16>
    %207 = arith.truncf %194 : vector<8x16xf32> to vector<8x16xbf16>
    %cst_105 = arith.constant dense<0.000000e+00> : vector<8x16xf32>
    %208 = tpu.matmul %206, %207, %cst_105 {dimension_numbers = #tpu.dot_dimension_numbers<[1], [0], [0], [1], [0, 0, 1, 1], [], []>} : vector<8x8xbf16>, vector<8x16xbf16>, vector<8x16xf32> -> vector<8x16xf32>
    %c9 = arith.constant 9 : index
    %c0_106 = arith.constant 0 : index
    %c0_107 = arith.constant 0 : index
    %209 = vector.load %arg5[%c9, %c0_106, %c0_107] : memref<12x32x16xbf16, #tpu.memory_space<vmem>>, vector<1x32x16xbf16>
    %210 = vector.shape_cast %209 : vector<1x32x16xbf16> to vector<32x16xbf16>
    %cst_108 = arith.constant dense<0.000000e+00> : vector<8x16xf32>
    %211 = tpu.matmul %181, %210, %cst_108 {dimension_numbers = #tpu.dot_dimension_numbers<[1], [0], [0], [1], [0, 0, 1, 1], [], []>} : vector<8x32xbf16>, vector<32x16xbf16>, vector<8x16xf32> -> vector<8x16xf32>
    %c1_109 = arith.constant 1 : index
    %c1_110 = arith.constant 1 : index
    %c0_111 = arith.constant 0 : index
    %212 = vector.load %arg3[%c1_109, %c1_110, %c0_111] : memref<2x16x128xf32, #tpu.memory_space<vmem>>, vector<1x1x16xf32>
    %213 = vector.shape_cast %212 : vector<1x1x16xf32> to vector<1x16xf32>
    %214 = vector.broadcast %213 : vector<1x16xf32> to vector<8x16xf32>
    %215 = arith.addf %211, %214 : vector<8x16xf32>
    %c10 = arith.constant 10 : index
    %c0_112 = arith.constant 0 : index
    %c0_113 = arith.constant 0 : index
    %216 = vector.load %arg5[%c10, %c0_112, %c0_113] : memref<12x32x16xbf16, #tpu.memory_space<vmem>>, vector<1x32x16xbf16>
    %217 = vector.shape_cast %216 : vector<1x32x16xbf16> to vector<32x16xbf16>
    %cst_114 = arith.constant dense<0.000000e+00> : vector<8x16xf32>
    %218 = tpu.matmul %181, %217, %cst_114 {dimension_numbers = #tpu.dot_dimension_numbers<[1], [0], [0], [1], [0, 0, 1, 1], [], []>} : vector<8x32xbf16>, vector<32x16xbf16>, vector<8x16xf32> -> vector<8x16xf32>
    %c11 = arith.constant 11 : index
    %c0_115 = arith.constant 0 : index
    %c0_116 = arith.constant 0 : index
    %219 = vector.load %arg5[%c11, %c0_115, %c0_116] : memref<12x32x16xbf16, #tpu.memory_space<vmem>>, vector<1x32x16xbf16>
    %220 = vector.shape_cast %219 : vector<1x32x16xbf16> to vector<32x16xbf16>
    %cst_117 = arith.constant dense<0.000000e+00> : vector<8x16xf32>
    %221 = tpu.matmul %181, %220, %cst_117 {dimension_numbers = #tpu.dot_dimension_numbers<[1], [0], [0], [1], [0, 0, 1, 1], [], []>} : vector<8x32xbf16>, vector<32x16xbf16>, vector<8x16xf32> -> vector<8x16xf32>
    %222 = arith.truncf %215 : vector<8x16xf32> to vector<8x16xbf16>
    %223 = arith.truncf %218 : vector<8x16xf32> to vector<8x16xbf16>
    %cst_118 = arith.constant dense<0.000000e+00> : vector<8x8xf32>
    %224 = tpu.matmul %222, %223, %cst_118 {dimension_numbers = #tpu.dot_dimension_numbers<[1], [1], [0], [0], [0, 0, 1, 0], [], []>} : vector<8x16xbf16>, vector<8x16xbf16>, vector<8x8xf32> -> vector<8x8xf32>
    %225 = vector.broadcast %29 : vector<1x8xf32> to vector<8x8xf32>
    %226 = arith.addf %224, %225 : vector<8x8xf32>
    %227 = math.exp %226 : vector<8x8xf32>
    %cst_119 = arith.constant dense<0.000000e+00> : vector<8xf32>
    %228 = vector.multi_reduction <add>, %227, %cst_119 [1] : vector<8x8xf32> to vector<8xf32>
    %229 = vector.shape_cast %228 : vector<8xf32> to vector<8x1xf32>
    %230 = tpu.reciprocal %229 {approx = true} : vector<8x1xf32> -> vector<8x1xf32>
    %231 = vector.broadcast %230 : vector<8x1xf32> to vector<8x8xf32>
    %232 = arith.mulf %227, %231 : vector<8x8xf32>
    %233 = arith.truncf %232 : vector<8x8xf32> to vector<8x8xbf16>
    %234 = arith.truncf %221 : vector<8x16xf32> to vector<8x16xbf16>
    %cst_120 = arith.constant dense<0.000000e+00> : vector<8x16xf32>
    %235 = tpu.matmul %233, %234, %cst_120 {dimension_numbers = #tpu.dot_dimension_numbers<[1], [0], [0], [1], [0, 0, 1, 1], [], []>} : vector<8x8xbf16>, vector<8x16xbf16>, vector<8x16xf32> -> vector<8x16xf32>
    %236 = tpu.concatenate %208, %235 in 1 : vector<8x16xf32>, vector<8x16xf32> -> vector<8x32xf32>
    %237 = arith.truncf %236 : vector<8x32xf32> to vector<8x32xbf16>
    %c1_121 = arith.constant 1 : index
    %c0_122 = arith.constant 0 : index
    %c0_123 = arith.constant 0 : index
    %238 = vector.load %arg6[%c1_121, %c0_122, %c0_123] : memref<2x32x32xbf16, #tpu.memory_space<vmem>>, vector<1x32x32xbf16>
    %239 = vector.shape_cast %238 : vector<1x32x32xbf16> to vector<32x32xbf16>
    %cst_124 = arith.constant dense<0.000000e+00> : vector<8x32xf32>
    %240 = tpu.matmul %237, %239, %cst_124 {dimension_numbers = #tpu.dot_dimension_numbers<[1], [0], [0], [1], [0, 0, 1, 1], [], []>} : vector<8x32xbf16>, vector<32x32xbf16>, vector<8x32xf32> -> vector<8x32xf32>
    %c1_125 = arith.constant 1 : index
    %c2_126 = arith.constant 2 : index
    %c0_127 = arith.constant 0 : index
    %241 = vector.load %arg3[%c1_125, %c2_126, %c0_127] : memref<2x16x128xf32, #tpu.memory_space<vmem>>, vector<1x1x32xf32>
    %242 = vector.shape_cast %241 : vector<1x1x32xf32> to vector<1x32xf32>
    %243 = vector.broadcast %242 : vector<1x32xf32> to vector<8x32xf32>
    %244 = arith.addf %240, %243 : vector<8x32xf32>
    %245 = arith.addf %180, %244 : vector<8x32xf32>
    %c1_128 = arith.constant 1 : index
    %c3_129 = arith.constant 3 : index
    %c0_130 = arith.constant 0 : index
    %246 = vector.load %arg3[%c1_128, %c3_129, %c0_130] : memref<2x16x128xf32, #tpu.memory_space<vmem>>, vector<1x1x32xf32>
    %247 = vector.shape_cast %246 : vector<1x1x32xf32> to vector<1x32xf32>
    %c1_131 = arith.constant 1 : index
    %c4_132 = arith.constant 4 : index
    %c0_133 = arith.constant 0 : index
    %248 = vector.load %arg3[%c1_131, %c4_132, %c0_133] : memref<2x16x128xf32, #tpu.memory_space<vmem>>, vector<1x1x32xf32>
    %249 = vector.shape_cast %248 : vector<1x1x32xf32> to vector<1x32xf32>
    %cst_134 = arith.constant dense<0.000000e+00> : vector<8xf32>
    %250 = vector.multi_reduction <add>, %245, %cst_134 [1] : vector<8x32xf32> to vector<8xf32>
    %251 = vector.shape_cast %250 : vector<8xf32> to vector<8x1xf32>
    %cst_135 = arith.constant 3.200000e+01 : f32
    %252 = vector.broadcast %cst_135 : f32 to vector<8x1xf32>
    %253 = arith.divf %251, %252 : vector<8x1xf32>
    %254 = vector.broadcast %253 : vector<8x1xf32> to vector<8x32xf32>
    %255 = arith.subf %245, %254 : vector<8x32xf32>
    %256 = vector.broadcast %253 : vector<8x1xf32> to vector<8x32xf32>
    %257 = arith.subf %245, %256 : vector<8x32xf32>
    %258 = arith.mulf %255, %257 : vector<8x32xf32>
    %cst_136 = arith.constant dense<0.000000e+00> : vector<8xf32>
    %259 = vector.multi_reduction <add>, %258, %cst_136 [1] : vector<8x32xf32> to vector<8xf32>
    %260 = vector.shape_cast %259 : vector<8xf32> to vector<8x1xf32>
    %cst_137 = arith.constant 3.200000e+01 : f32
    %261 = vector.broadcast %cst_137 : f32 to vector<8x1xf32>
    %262 = arith.divf %260, %261 : vector<8x1xf32>
    %263 = vector.broadcast %253 : vector<8x1xf32> to vector<8x32xf32>
    %264 = arith.subf %245, %263 : vector<8x32xf32>
    %cst_138 = arith.constant 9.99999996E-13 : f32
    %265 = vector.broadcast %cst_138 : f32 to vector<8x1xf32>
    %266 = arith.addf %262, %265 : vector<8x1xf32>
    %267 = math.rsqrt %266 : vector<8x1xf32>
    %268 = vector.broadcast %267 : vector<8x1xf32> to vector<8x32xf32>
    %269 = arith.mulf %264, %268 : vector<8x32xf32>
    %270 = vector.broadcast %247 : vector<1x32xf32> to vector<8x32xf32>
    %271 = arith.mulf %269, %270 : vector<8x32xf32>
    %272 = vector.broadcast %249 : vector<1x32xf32> to vector<8x32xf32>
    %273 = arith.addf %271, %272 : vector<8x32xf32>
    %274 = arith.truncf %273 : vector<8x32xf32> to vector<8x32xbf16>
    %c1_139 = arith.constant 1 : index
    %c0_140 = arith.constant 0 : index
    %c0_141 = arith.constant 0 : index
    %275 = vector.load %arg7[%c1_139, %c0_140, %c0_141] : memref<2x32x64xbf16, #tpu.memory_space<vmem>>, vector<1x32x64xbf16>
    %276 = vector.shape_cast %275 : vector<1x32x64xbf16> to vector<32x64xbf16>
    %cst_142 = arith.constant dense<0.000000e+00> : vector<8x64xf32>
    %277 = tpu.matmul %274, %276, %cst_142 {dimension_numbers = #tpu.dot_dimension_numbers<[1], [0], [0], [1], [0, 0, 1, 1], [], []>} : vector<8x32xbf16>, vector<32x64xbf16>, vector<8x64xf32> -> vector<8x64xf32>
    %c1_143 = arith.constant 1 : index
    %c5_144 = arith.constant 5 : index
    %c0_145 = arith.constant 0 : index
    %278 = vector.load %arg3[%c1_143, %c5_144, %c0_145] : memref<2x16x128xf32, #tpu.memory_space<vmem>>, vector<1x1x64xf32>
    %279 = vector.shape_cast %278 : vector<1x1x64xf32> to vector<1x64xf32>
    %280 = vector.broadcast %279 : vector<1x64xf32> to vector<8x64xf32>
    %281 = arith.addf %277, %280 : vector<8x64xf32>
    %cst_146 = arith.constant 5.000000e-01 : f32
    %282 = vector.broadcast %cst_146 : f32 to vector<8x64xf32>
    %283 = arith.mulf %282, %281 : vector<8x64xf32>
    %cst_147 = arith.constant 4.471500e-02 : f32
    %284 = vector.broadcast %cst_147 : f32 to vector<8x64xf32>
    %285 = arith.mulf %284, %281 : vector<8x64xf32>
    %286 = arith.mulf %285, %281 : vector<8x64xf32>
    %287 = arith.mulf %286, %281 : vector<8x64xf32>
    %288 = arith.addf %281, %287 : vector<8x64xf32>
    %cst_148 = arith.constant 0.797884583 : f32
    %289 = vector.broadcast %cst_148 : f32 to vector<8x64xf32>
    %290 = arith.mulf %289, %288 : vector<8x64xf32>
    %291 = math.tanh %290 : vector<8x64xf32>
    %cst_149 = arith.constant 1.000000e+00 : f32
    %292 = vector.broadcast %cst_149 : f32 to vector<8x64xf32>
    %293 = arith.addf %292, %291 : vector<8x64xf32>
    %294 = arith.mulf %283, %293 : vector<8x64xf32>
    %295 = arith.truncf %294 : vector<8x64xf32> to vector<8x64xbf16>
    %c1_150 = arith.constant 1 : index
    %c0_151 = arith.constant 0 : index
    %c0_152 = arith.constant 0 : index
    %296 = vector.load %arg8[%c1_150, %c0_151, %c0_152] : memref<2x64x32xbf16, #tpu.memory_space<vmem>>, vector<1x64x32xbf16>
    %297 = vector.shape_cast %296 : vector<1x64x32xbf16> to vector<64x32xbf16>
    %cst_153 = arith.constant dense<0.000000e+00> : vector<8x32xf32>
    %298 = tpu.matmul %295, %297, %cst_153 {dimension_numbers = #tpu.dot_dimension_numbers<[1], [0], [0], [1], [0, 0, 1, 1], [], []>} : vector<8x64xbf16>, vector<64x32xbf16>, vector<8x32xf32> -> vector<8x32xf32>
    %c1_154 = arith.constant 1 : index
    %c6_155 = arith.constant 6 : index
    %c0_156 = arith.constant 0 : index
    %299 = vector.load %arg3[%c1_154, %c6_155, %c0_156] : memref<2x16x128xf32, #tpu.memory_space<vmem>>, vector<1x1x32xf32>
    %300 = vector.shape_cast %299 : vector<1x1x32xf32> to vector<1x32xf32>
    %301 = vector.broadcast %300 : vector<1x32xf32> to vector<8x32xf32>
    %302 = arith.addf %298, %301 : vector<8x32xf32>
    %303 = arith.addf %273, %302 : vector<8x32xf32>
    %c1_157 = arith.constant 1 : index
    %c7_158 = arith.constant 7 : index
    %c0_159 = arith.constant 0 : index
    %304 = vector.load %arg3[%c1_157, %c7_158, %c0_159] : memref<2x16x128xf32, #tpu.memory_space<vmem>>, vector<1x1x32xf32>
    %305 = vector.shape_cast %304 : vector<1x1x32xf32> to vector<1x32xf32>
    %c1_160 = arith.constant 1 : index
    %c8_161 = arith.constant 8 : index
    %c0_162 = arith.constant 0 : index
    %306 = vector.load %arg3[%c1_160, %c8_161, %c0_162] : memref<2x16x128xf32, #tpu.memory_space<vmem>>, vector<1x1x32xf32>
    %307 = vector.shape_cast %306 : vector<1x1x32xf32> to vector<1x32xf32>
    %cst_163 = arith.constant dense<0.000000e+00> : vector<8xf32>
    %308 = vector.multi_reduction <add>, %303, %cst_163 [1] : vector<8x32xf32> to vector<8xf32>
    %309 = vector.shape_cast %308 : vector<8xf32> to vector<8x1xf32>
    %cst_164 = arith.constant 3.200000e+01 : f32
    %310 = vector.broadcast %cst_164 : f32 to vector<8x1xf32>
    %311 = arith.divf %309, %310 : vector<8x1xf32>
    %312 = vector.broadcast %311 : vector<8x1xf32> to vector<8x32xf32>
    %313 = arith.subf %303, %312 : vector<8x32xf32>
    %314 = vector.broadcast %311 : vector<8x1xf32> to vector<8x32xf32>
    %315 = arith.subf %303, %314 : vector<8x32xf32>
    %316 = arith.mulf %313, %315 : vector<8x32xf32>
    %cst_165 = arith.constant dense<0.000000e+00> : vector<8xf32>
    %317 = vector.multi_reduction <add>, %316, %cst_165 [1] : vector<8x32xf32> to vector<8xf32>
    %318 = vector.shape_cast %317 : vector<8xf32> to vector<8x1xf32>
    %cst_166 = arith.constant 3.200000e+01 : f32
    %319 = vector.broadcast %cst_166 : f32 to vector<8x1xf32>
    %320 = arith.divf %318, %319 : vector<8x1xf32>
    %321 = vector.broadcast %311 : vector<8x1xf32> to vector<8x32xf32>
    %322 = arith.subf %303, %321 : vector<8x32xf32>
    %cst_167 = arith.constant 9.99999996E-13 : f32
    %323 = vector.broadcast %cst_167 : f32 to vector<8x1xf32>
    %324 = arith.addf %320, %323 : vector<8x1xf32>
    %325 = math.rsqrt %324 : vector<8x1xf32>
    %326 = vector.broadcast %325 : vector<8x1xf32> to vector<8x32xf32>
    %327 = arith.mulf %322, %326 : vector<8x32xf32>
    %328 = vector.broadcast %305 : vector<1x32xf32> to vector<8x32xf32>
    %329 = arith.mulf %327, %328 : vector<8x32xf32>
    %330 = vector.broadcast %307 : vector<1x32xf32> to vector<8x32xf32>
    %331 = arith.addf %329, %330 : vector<8x32xf32>
    %332 = vector.extract_strided_slice %331 {offsets = [0, 0], sizes = [1, 32], strides = [1, 1]} : vector<8x32xf32> to vector<1x32xf32>
    %333 = arith.truncf %332 : vector<1x32xf32> to vector<1x32xbf16>
    %c0_168 = arith.constant 0 : index
    %c0_169 = arith.constant 0 : index
    %334 = vector.load %arg9[%c0_168, %c0_169] : memref<32x256xbf16, #tpu.memory_space<vmem>>, vector<32x32xbf16>
    %cst_170 = arith.constant dense<0.000000e+00> : vector<1x32xf32>
    %335 = tpu.matmul %333, %334, %cst_170 {dimension_numbers = #tpu.dot_dimension_numbers<[1], [0], [0], [1], [0, 0, 1, 1], [], []>} : vector<1x32xbf16>, vector<32x32xbf16>, vector<1x32xf32> -> vector<1x32xf32>
    %c2_171 = arith.constant 2 : index
    %c0_172 = arith.constant 0 : index
    %336 = vector.load %arg4[%c2_171, %c0_172] : memref<8x128xf32, #tpu.memory_space<vmem>>, vector<1x32xf32>
    %337 = arith.addf %335, %336 : vector<1x32xf32>
    %338 = math.tanh %337 : vector<1x32xf32>
    %339 = arith.truncf %338 : vector<1x32xf32> to vector<1x32xbf16>
    %c0_173 = arith.constant 0 : index
    %c128 = arith.constant 128 : index
    %340 = vector.load %arg9[%c0_173, %c128] : memref<32x256xbf16, #tpu.memory_space<vmem>>, vector<32x128xbf16>
    %cst_174 = arith.constant dense<0.000000e+00> : vector<1x128xf32>
    %341 = tpu.matmul %339, %340, %cst_174 {dimension_numbers = #tpu.dot_dimension_numbers<[1], [0], [0], [1], [0, 0, 1, 1], [], []>} : vector<1x32xbf16>, vector<32x128xbf16>, vector<1x128xf32> -> vector<1x128xf32>
    %c3_175 = arith.constant 3 : index
    %c0_176 = arith.constant 0 : index
    %342 = vector.load %arg4[%c3_175, %c0_176] : memref<8x128xf32, #tpu.memory_space<vmem>>, vector<1x128xf32>
    %343 = arith.addf %341, %342 : vector<1x128xf32>
    %344 = vector.shape_cast %343 : vector<1x128xf32> to vector<1x1x128xf32>
    %345 = vector.broadcast %344 : vector<1x1x128xf32> to vector<1x8x128xf32>
    %c0_177 = arith.constant 0 : index
    %c0_178 = arith.constant 0 : index
    %c0_179 = arith.constant 0 : index
    %346 = vector.load %arg10[%c0_177, %c0_178, %c0_179] : memref<1x8x128xf32, #tpu.memory_space<vmem>>, vector<1x8x128xf32>
    tpu.vector_store %arg10[%c0_177, %c0_178, %c0_179], %345 {strides = array<i32>} : memref<1x8x128xf32, #tpu.memory_space<vmem>>, vector<1x8x128xf32>,
    return
  }
  func.func @transform_0(%arg0: i32) -> (i32, i32, i32) {
    %c0_i32 = arith.constant 0 : i32
    %c0_i32_0 = arith.constant 0 : i32
    %c0_i32_1 = arith.constant 0 : i32
    return %arg0, %c0_i32, %c0_i32_0 : i32, i32, i32
  }
  func.func @transform_1(%arg0: i32) -> (i32, i32, i32) {
    %c0_i32 = arith.constant 0 : i32
    %c0_i32_0 = arith.constant 0 : i32
    %c0_i32_1 = arith.constant 0 : i32
    return %arg0, %c0_i32, %c0_i32_0 : i32, i32, i32
  }
  func.func @transform_2(%arg0: i32) -> (i32, i32, i32) {
    %c0_i32 = arith.constant 0 : i32
    %c0_i32_0 = arith.constant 0 : i32
    %c0_i32_1 = arith.constant 0 : i32
    %c0_i32_2 = arith.constant 0 : i32
    return %c0_i32, %c0_i32_0, %c0_i32_1 : i32, i32, i32
  }
  func.func @transform_3(%arg0: i32) -> (i32, i32) {
    %c0_i32 = arith.constant 0 : i32
    %c0_i32_0 = arith.constant 0 : i32
    %c0_i32_1 = arith.constant 0 : i32
    return %c0_i32, %c0_i32_0 : i32, i32
  }
  func.func @transform_4(%arg0: i32) -> (i32, i32, i32) {
    %c0_i32 = arith.constant 0 : i32
    %c0_i32_0 = arith.constant 0 : i32
    %c0_i32_1 = arith.constant 0 : i32
    %c0_i32_2 = arith.constant 0 : i32
    return %c0_i32, %c0_i32_0, %c0_i32_1 : i32, i32, i32
  }
  func.func @transform_5(%arg0: i32) -> (i32, i32, i32) {
    %c0_i32 = arith.constant 0 : i32
    %c0_i32_0 = arith.constant 0 : i32
    %c0_i32_1 = arith.constant 0 : i32
    %c0_i32_2 = arith.constant 0 : i32
    return %c0_i32, %c0_i32_0, %c0_i32_1 : i32, i32, i32
  }
  func.func @transform_6(%arg0: i32) -> (i32, i32, i32) {
    %c0_i32 = arith.constant 0 : i32
    %c0_i32_0 = arith.constant 0 : i32
    %c0_i32_1 = arith.constant 0 : i32
    %c0_i32_2 = arith.constant 0 : i32
    return %c0_i32, %c0_i32_0, %c0_i32_1 : i32, i32, i32
  }
  func.func @transform_7(%arg0: i32) -> (i32, i32, i32) {
    %c0_i32 = arith.constant 0 : i32
    %c0_i32_0 = arith.constant 0 : i32
    %c0_i32_1 = arith.constant 0 : i32
    %c0_i32_2 = arith.constant 0 : i32
    return %c0_i32, %c0_i32_0, %c0_i32_1 : i32, i32, i32
  }
  func.func @transform_8(%arg0: i32) -> (i32, i32) {
    %c0_i32 = arith.constant 0 : i32
    %c0_i32_0 = arith.constant 0 : i32
    %c0_i32_1 = arith.constant 0 : i32
    return %c0_i32, %c0_i32_0 : i32, i32
  }
  func.func @transform_9(%arg0: i32) -> (i32, i32, i32) {
    %c0_i32 = arith.constant 0 : i32
    %c0_i32_0 = arith.constant 0 : i32
    %c0_i32_1 = arith.constant 0 : i32
    return %arg0, %c0_i32, %c0_i32_0 : i32, i32, i32
  }
}

</mosaic_0001>

<llo_original>
// kernel: _lambda_.1
$region0: #{_lambda_.1}
  #allocation0 [shape = 'u32[]', space=smem, size = 0x4, offset = 0x4, fixed_abs, tag = 'smem constant byte address 0x4 - core index']
  #allocation1 [shape = 'u32[144,128]{1,0:T(1,128)}', space=vmem, size = 0x12000, scoped, tag = 'internal scratch']
  %s0 = inlined_call_operand.vmem [shape: f32[2,8,32], index: 0, kind: input, shape index: {}]
  %s1 = inlined_call_operand.vmem [shape: f32[2,1,8], index: 1, kind: input, shape index: {}]
  %s2 = inlined_call_operand.hbm [shape: f32[2,16,128], index: 2, kind: input, shape index: {}]
  %s3 = inlined_call_operand.hbm [shape: f32[8,128], index: 3, kind: input, shape index: {}]
  %s4 = inlined_call_operand.vmem [shape: bf16[12,32,16], index: 4, kind: input, shape index: {}]
  %s5 = inlined_call_operand.hbm [shape: bf16[2,32,32], index: 5, kind: input, shape index: {}]
  %s6 = inlined_call_operand.hbm [shape: bf16[2,32,64], index: 6, kind: input, shape index: {}]
  %s7 = inlined_call_operand.hbm [shape: bf16[2,64,32], index: 7, kind: input, shape index: {}]
  %s8 = inlined_call_operand.vmem [shape: bf16[32,256], index: 8, kind: input, shape index: {}]
  %s9 = inlined_call_operand.vmem [shape: f32[2,8,128], index: 9, kind: output, shape index: {}]
  %s10 = sld [smem:[#allocation0]]
  $region89: #{_lambda_.1} parent=0
    _
  %s12 = ssub.s32 1, %s10
  %s13 = scalar_select 0, %s12, %s10
  $region1: #{_lambda_.1} parent=0
    #allocation2 [shape = 'u8[16384]{0}', space=vmem, size = 0x4000, scoped, tag = 'input window, operand 2, single buffered']
    #allocation3 [shape = 's32[2]{0}', space=sflag, size = 0x8, scoped, tag = 'scoped memory for _lambda_.1']
    #allocation4 [shape = 'u8[4096]{0}', space=vmem, size = 0x1000, scoped, tag = 'input window, operand 3, single buffered']
    #allocation5 [shape = 's32[1]{0}', space=sflag, size = 0x4, scoped, tag = 'scoped memory for _lambda_.1']
    #allocation6 [shape = 'u8[16384]{0}', space=vmem, size = 0x4000, scoped, tag = 'input window, operand 5, single buffered']
    #allocation7 [shape = 'u8[16384]{0}', space=vmem, size = 0x4000, scoped, tag = 'input window, operand 6, single buffered']
    #allocation8 [shape = 's32[1]{0}', space=sflag, size = 0x4, scoped, tag = 'scoped memory for _lambda_.1']
    #allocation9 [shape = 'u8[32768]{0}', space=vmem, size = 0x8000, scoped, tag = 'input window, operand 7, single buffered']
    %14 = vsyncpa [#allocation3], 0
    %15 = vsyncpa [#allocation5], 0
    %16 = vsyncpa [#allocation8], 0
    loop: start=0, step=1, limit=4
    $region2: #{_lambda_.1} parent=1 // loop_pre_header
      _
    $region3: #{_lambda_.1} parent=1 // loop_header
      %s18 = sphi 0, %s22
      %p19 = scmp.ge.s32.totalorder %s18, 4
      %s28 = sphi 0, %s30
      %s31 = sphi 0, %s28
      %s32 = sphi 0, %s31
      %s48 = sphi 0, %s32
      %s54 = sphi 0, %s56
      %s57 = sphi 0, %s54
      %s58 = sphi 0, %s57
      %s74 = sphi 0, %s58
      %s78 = sphi 0, %s78
      %s80 = sphi 0, %s78
      %s81 = sphi 0, %s80
      %s95 = sphi 0, %s81
      %s99 = sphi 0, %s99
      %s101 = sphi 0, %s99
      %s102 = sphi 0, %s101
      %s116 = sphi 0, %s102
      %s120 = sphi 0, %s120
      %s122 = sphi 0, %s120
      %s123 = sphi 0, %s122
      %s137 = sphi 0, %s123
      %s141 = sphi 0, %s141
      %s143 = sphi 0, %s141
      %s144 = sphi 0, %s143
      %s158 = sphi 0, %s144
      %s162 = sphi 0, %s162
      %s164 = sphi 0, %s162
      %s165 = sphi 0, %s164
      %s179 = sphi 0, %s165
      %s183 = sphi 0, %s183
      %s185 = sphi 0, %s183
      %s186 = sphi 0, %s185
      %s200 = sphi 0, %s186
      %s204 = sphi 0, %s204
      %s206 = sphi 0, %s204
      %s207 = sphi 0, %s206
      %s221 = sphi 0, %s207
      %s227 = sphi 0, %s229
      %s230 = sphi 0, %s227
      %s231 = sphi 0, %s230
      %s247 = sphi 0, %s231
    $region4: #{_lambda_.1} parent=1 // loop_header_branch
      %21 = sbr.rel (%p19) target = $region8
    $region5: #{_lambda_.1} parent=1 // loop_body
      %s23 = ssub.s32 %s18, 1
      %s24 = ssub.s32 %s18, 2
      %s25 = sadd.s32 %s18, 1
      %s26 = ssub.s32 %s18, %s25
      %p27 = scmp.eq.s32.totalorder %s26, 0
      %s29 = sadd.s32 %s28, 1
      %s30 = scalar_select %p27, %s28, %s29
      %p33 = pneg %p27
      %p34 = scmp.eq.s32.totalorder %s18, 1
      %p35 = por %p33, %p34
      %p36 = scmp.ne.s32.totalorder %s28, %s31
      %p37 = scmp.eq.s32.totalorder %s18, 0
      %p38 = por %p36, %p37
      %p39 = scmp.ne.s32.totalorder %s28, %s31
      %p40 = scmp.eq.s32.totalorder %s23, 1
      %p41 = por %p39, %p40
      %p42 = scmp.ne.s32.totalorder %s31, %s32
      %p43 = scmp.eq.s32.totalorder %s23, 0
      %p44 = por %p42, %p43
      %p45 = scmp.ne.s32.totalorder %s31, %s32
      %p46 = scmp.eq.s32.totalorder %s24, 1
      %p47 = por %p45, %p46
      %p49 = scmp.ne.s32.totalorder %s32, %s48
      %p50 = scmp.eq.s32.totalorder %s24, 0
      %p51 = por %p49, %p50
      %s52 = ssub.s32 %s18, %s25
      %p53 = scmp.eq.s32.totalorder %s52, 0
      %s55 = sadd.s32 %s54, 1
      %s56 = scalar_select %p53, %s54, %s55
      %p59 = pneg %p53
      %p60 = scmp.eq.s32.totalorder %s18, 1
      %p61 = por %p59, %p60
      %p62 = scmp.ne.s32.totalorder %s54, %s57
      %p63 = scmp.eq.s32.totalorder %s18, 0
      %p64 = por %p62, %p63
      %p65 = scmp.ne.s32.totalorder %s54, %s57
      %p66 = scmp.eq.s32.totalorder %s23, 1
      %p67 = por %p65, %p66
      %p68 = scmp.ne.s32.totalorder %s57, %s58
      %p69 = scmp.eq.s32.totalorder %s23, 0
      %p70 = por %p68, %p69
      %p71 = scmp.ne.s32.totalorder %s57, %s58
      %p72 = scmp.eq.s32.totalorder %s24, 1
      %p73 = por %p71, %p72
      %p75 = scmp.ne.s32.totalorder %s58, %s74
      %p76 = scmp.eq.s32.totalorder %s24, 0
      %p77 = por %p75, %p76
      %s79 = sadd.s32 %s78, 1
      %p82 = scmp.eq.s32.totalorder %s18, 1
      %p83 = scmp.ne.s32.totalorder %s78, %s80
      %p84 = scmp.eq.s32.totalorder %s18, 0
      %p85 = por %p83, %p84
      %p86 = scmp.ne.s32.totalorder %s78, %s80
      %p87 = scmp.eq.s32.totalorder %s23, 1
      %p88 = por %p86, %p87
      %p89 = scmp.ne.s32.totalorder %s80, %s81
      %p90 = scmp.eq.s32.totalorder %s23, 0
      %p91 = por %p89, %p90
      %p92 = scmp.ne.s32.totalorder %s80, %s81
      %p93 = scmp.eq.s32.totalorder %s24, 1
      %p94 = por %p92, %p93
      %p96 = scmp.ne.s32.totalorder %s81, %s95
      %p97 = scmp.eq.s32.totalorder %s24, 0
      %p98 = por %p96, %p97
      %s100 = sadd.s32 %s99, 1
      %p103 = scmp.eq.s32.totalorder %s18, 1
      %p104 = scmp.ne.s32.totalorder %s99, %s101
      %p105 = scmp.eq.s32.totalorder %s18, 0
      %p106 = por %p104, %p105
      %p107 = scmp.ne.s32.totalorder %s99, %s101
      %p108 = scmp.eq.s32.totalorder %s23, 1
      %p109 = por %p107, %p108
      %p110 = scmp.ne.s32.totalorder %s101, %s102
      %p111 = scmp.eq.s32.totalorder %s23, 0
      %p112 = por %p110, %p111
      %p113 = scmp.ne.s32.totalorder %s101, %s102
      %p114 = scmp.eq.s32.totalorder %s24, 1
      %p115 = por %p113, %p114
      %p117 = scmp.ne.s32.totalorder %s102, %s116
      %p118 = scmp.eq.s32.totalorder %s24, 0
      %p119 = por %p117, %p118
      %s121 = sadd.s32 %s120, 1
      %p124 = scmp.eq.s32.totalorder %s18, 1
      %p125 = scmp.ne.s32.totalorder %s120, %s122
      %p126 = scmp.eq.s32.totalorder %s18, 0
      %p127 = por %p125, %p126
      %p128 = scmp.ne.s32.totalorder %s120, %s122
      %p129 = scmp.eq.s32.totalorder %s23, 1
      %p130 = por %p128, %p129
      %p131 = scmp.ne.s32.totalorder %s122, %s123
      %p132 = scmp.eq.s32.totalorder %s23, 0
      %p133 = por %p131, %p132
      %p134 = scmp.ne.s32.totalorder %s122, %s123
      %p135 = scmp.eq.s32.totalorder %s24, 1
      %p136 = por %p134, %p135
      %p138 = scmp.ne.s32.totalorder %s123, %s137
      %p139 = scmp.eq.s32.totalorder %s24, 0
      %p140 = por %p138, %p139
      %s142 = sadd.s32 %s141, 1
      %p145 = scmp.eq.s32.totalorder %s18, 1
      %p146 = scmp.ne.s32.totalorder %s141, %s143
      %p147 = scmp.eq.s32.totalorder %s18, 0
      %p148 = por %p146, %p147
      %p149 = scmp.ne.s32.totalorder %s141, %s143
      %p150 = scmp.eq.s32.totalorder %s23, 1
      %p151 = por %p149, %p150
      %p152 = scmp.ne.s32.totalorder %s143, %s144
      %p153 = scmp.eq.s32.totalorder %s23, 0
      %p154 = por %p152, %p153
      %p155 = scmp.ne.s32.totalorder %s143, %s144
      %p156 = scmp.eq.s32.totalorder %s24, 1
      %p157 = por %p155, %p156
      %p159 = scmp.ne.s32.totalorder %s144, %s158
      %p160 = scmp.eq.s32.totalorder %s24, 0
      %p161 = por %p159, %p160
      %s163 = sadd.s32 %s162, 1
      %p166 = scmp.eq.s32.totalorder %s18, 1
      %p167 = scmp.ne.s32.totalorder %s162, %s164
      %p168 = scmp.eq.s32.totalorder %s18, 0
      %p169 = por %p167, %p168
      %p170 = scmp.ne.s32.totalorder %s162, %s164
      %p171 = scmp.eq.s32.totalorder %s23, 1
      %p172 = por %p170, %p171
      %p173 = scmp.ne.s32.totalorder %s164, %s165
      %p174 = scmp.eq.s32.totalorder %s23, 0
      %p175 = por %p173, %p174
      %p176 = scmp.ne.s32.totalorder %s164, %s165
      %p177 = scmp.eq.s32.totalorder %s24, 1
      %p178 = por %p176, %p177
      %p180 = scmp.ne.s32.totalorder %s165, %s179
      %p181 = scmp.eq.s32.totalorder %s24, 0
      %p182 = por %p180, %p181
      %s184 = sadd.s32 %s183, 1
      %p187 = scmp.eq.s32.totalorder %s18, 1
      %p188 = scmp.ne.s32.totalorder %s183, %s185
      %p189 = scmp.eq.s32.totalorder %s18, 0
      %p190 = por %p188, %p189
      %p191 = scmp.ne.s32.totalorder %s183, %s185
      %p192 = scmp.eq.s32.totalorder %s23, 1
      %p193 = por %p191, %p192
      %p194 = scmp.ne.s32.totalorder %s185, %s186
      %p195 = scmp.eq.s32.totalorder %s23, 0
      %p196 = por %p194, %p195
      %p197 = scmp.ne.s32.totalorder %s185, %s186
      %p198 = scmp.eq.s32.totalorder %s24, 1
      %p199 = por %p197, %p198
      %p201 = scmp.ne.s32.totalorder %s186, %s200
      %p202 = scmp.eq.s32.totalorder %s24, 0
      %p203 = por %p201, %p202
      %s205 = sadd.s32 %s204, 1
      %p208 = scmp.eq.s32.totalorder %s18, 1
      %p209 = scmp.ne.s32.totalorder %s204, %s206
      %p210 = scmp.eq.s32.totalorder %s18, 0
      %p211 = por %p209, %p210
      %p212 = scmp.ne.s32.totalorder %s204, %s206
      %p213 = scmp.eq.s32.totalorder %s23, 1
      %p214 = por %p212, %p213
      %p215 = scmp.ne.s32.totalorder %s206, %s207
      %p216 = scmp.eq.s32.totalorder %s23, 0
      %p217 = por %p215, %p216
      %p218 = scmp.ne.s32.totalorder %s206, %s207
      %p219 = scmp.eq.s32.totalorder %s24, 1
      %p220 = por %p218, %p219
      %p222 = scmp.ne.s32.totalorder %s207, %s221
      %p223 = scmp.eq.s32.totalorder %s24, 0
      %p224 = por %p222, %p223
      %s225 = ssub.s32 %s18, %s25
      %p226 = scmp.eq.s32.totalorder %s225, 0
      %s228 = sadd.s32 %s227, 1
      %s229 = scalar_select %p226, %s227, %s228
      %p232 = pneg %p226
      %p233 = scmp.eq.s32.totalorder %s18, 1
      %p234 = por %p232, %p233
      %p235 = scmp.ne.s32.totalorder %s227, %s230
      %p236 = scmp.eq.s32.totalorder %s18, 0
      %p237 = por %p235, %p236
      %p238 = scmp.ne.s32.totalorder %s227, %s230
      %p239 = scmp.eq.s32.totalorder %s23, 1
      %p240 = por %p238, %p239
      %p241 = scmp.ne.s32.totalorder %s230, %s231
      %p242 = scmp.eq.s32.totalorder %s23, 0
      %p243 = por %p241, %p242
      %p244 = scmp.ne.s32.totalorder %s230, %s231
      %p245 = scmp.eq.s32.totalorder %s24, 1
      %p246 = por %p244, %p245
      %p248 = scmp.ne.s32.totalorder %s231, %s247
      %p249 = scmp.eq.s32.totalorder %s24, 0
      %p250 = por %p248, %p249
      %p251 = scmp.le.s32.totalorder 1, %s18
      %p252 = scmp.lt.s32.totalorder %s18, 3
      %p253 = pnand %p251, %p252
      %p254 = pneg %p253
      // Predicated region
      $region9: #{_lambda_.1} parent=5 // pred_check
        _
      $region10: #{_lambda_.1} parent=5 // pred_check_branch
        %256 = sbr.rel (%p253) target = $region12
      $region11: #{_lambda_.1} parent=5 // pred_region
        %s257 = ssub.s32 %s18, 1
        // Predicated region
        $region13: #{_lambda_.1} parent=11 // pred_check
          %p258 = pneg %p91
        $region14: #{_lambda_.1} parent=11 // pred_check_branch
          %260 = sbr.rel (%p258) target = $region16
        $region15: #{_lambda_.1} parent=11 // pred_region
          %s262 = ssub.s32 512, 512
          %263 = vsyncadd [#allocation3], %s262
          %s264 = sshll.u32 [#allocation2], 4
          %s265 = int_to_ptr.vmem [resolvable:$true] %s264
          %270 = dma.hbm_to_vmem [thread:$0]  %s2, 512, %s265, [#allocation3], 128, 128, 8
        $region16: #{_lambda_.1} parent=11 // pred_fallthru
          _
        // Predicated region
        $region17: #{_lambda_.1} parent=11 // pred_check
          %p271 = pneg %p112
        $region18: #{_lambda_.1} parent=11 // pred_check_branch
          %273 = sbr.rel (%p271) target = $region20
        $region19: #{_lambda_.1} parent=11 // pred_region
          %s275 = ssub.s32 128, 128
          %276 = vsyncadd [#allocation5], %s275
          %s278 = sshll.u32 [#allocation4], 4
          %s279 = int_to_ptr.vmem [resolvable:$true] %s278
          %281 = dma.hbm_to_vmem [thread:$0]  %s3, 128, %s279, [#allocation5]
        $region20: #{_lambda_.1} parent=11 // pred_fallthru
          _
        // Predicated region
        $region21: #{_lambda_.1} parent=11 // pred_check
          %p282 = pneg %p133
        $region22: #{_lambda_.1} parent=11 // pred_check_branch
          %284 = sbr.rel (%p282) target = $region24
        $region23: #{_lambda_.1} parent=11 // pred_region
          _
        $region24: #{_lambda_.1} parent=11 // pred_fallthru
          _
        // Predicated region
        $region25: #{_lambda_.1} parent=11 // pred_check
          %p285 = pneg %p154
        $region26: #{_lambda_.1} parent=11 // pred_check_branch
          %287 = sbr.rel (%p285) target = $region28
        $region27: #{_lambda_.1} parent=11 // pred_region
          %s289 = ssub.s32 512, 512
          %290 = vsyncadd [#allocation5], %s289
          %s291 = sshll.u32 [#allocation6], 4
          %s292 = int_to_ptr.vmem [resolvable:$true] %s291
          %297 = dma.hbm_to_vmem [thread:$0]  %s5, 512, %s292, [#allocation5], 64, 64, 4
        $region28: #{_lambda_.1} parent=11 // pred_fallthru
          _
        // Predicated region
        $region29: #{_lambda_.1} parent=11 // pred_check
          %p298 = pneg %p175
        $region30: #{_lambda_.1} parent=11 // pred_check_branch
          %300 = sbr.rel (%p298) target = $region32
        $region31: #{_lambda_.1} parent=11 // pred_region
          %s302 = ssub.s32 512, 512
          %303 = vsyncadd [#allocation8], %s302
          %s304 = sshll.u32 [#allocation7], 4
          %s305 = int_to_ptr.vmem [resolvable:$true] %s304
          %310 = dma.hbm_to_vmem [thread:$0]  %s6, 512, %s305, [#allocation8], 64, 64, 4
        $region32: #{_lambda_.1} parent=11 // pred_fallthru
          _
        // Predicated region
        $region33: #{_lambda_.1} parent=11 // pred_check
          %p311 = pneg %p196
        $region34: #{_lambda_.1} parent=11 // pred_check_branch
          %313 = sbr.rel (%p311) target = $region36
        $region35: #{_lambda_.1} parent=11 // pred_region
          %s315 = ssub.s32 1024, 1024
          %316 = vsyncadd [#allocation8], %s315
          %s317 = sshll.u32 [#allocation9], 4
          %s318 = int_to_ptr.vmem [resolvable:$true] %s317
          %323 = dma.hbm_to_vmem [thread:$0]  %s7, 1024, %s318, [#allocation8], 64, 64, 4
        $region36: #{_lambda_.1} parent=11 // pred_fallthru
          _
        // Predicated region
        $region37: #{_lambda_.1} parent=11 // pred_check
          %p324 = pneg %p217
        $region38: #{_lambda_.1} parent=11 // pred_check_branch
          %326 = sbr.rel (%p324) target = $region40
        $region39: #{_lambda_.1} parent=11 // pred_region
          _
        $region40: #{_lambda_.1} parent=11 // pred_fallthru
          _
      $region12: #{_lambda_.1} parent=5 // pred_fallthru
        _
      %p327 = scmp.lt.s32.totalorder %s18, 2
      // Predicated region
      $region41: #{_lambda_.1} parent=5 // pred_check
        %p328 = pneg %p327
      $region42: #{_lambda_.1} parent=5 // pred_check_branch
        %330 = sbr.rel (%p328) target = $region44
      $region43: #{_lambda_.1} parent=5 // pred_region
        // Predicated region
        $region45: #{_lambda_.1} parent=43 // pred_check
          %p331 = pneg %p38
        $region46: #{_lambda_.1} parent=43 // pred_check_branch
          %333 = sbr.rel (%p331) target = $region48
        $region47: #{_lambda_.1} parent=43 // pred_region
          %p334 = scmp.lt.s32.totalorder %s18, 1
          %s335 = scalar_select %p334, %s18, 1
          %s336 = smul.addr %s335, 8
          %s337 = scalar_lea.vmem %s0, %s336
        $region48: #{_lambda_.1} parent=43 // pred_fallthru
          _
        // Predicated region
        $region49: #{_lambda_.1} parent=43 // pred_check
          %p338 = pneg %p64
        $region50: #{_lambda_.1} parent=43 // pred_check_branch
          %340 = sbr.rel (%p338) target = $region52
        $region51: #{_lambda_.1} parent=43 // pred_region
          %p341 = scmp.lt.s32.totalorder %s18, 1
          %s342 = scalar_select %p341, %s18, 1
          %s343 = scalar_lea.vmem %s1, %s342
        $region52: #{_lambda_.1} parent=43 // pred_fallthru
          _
      $region44: #{_lambda_.1} parent=5 // pred_fallthru
        _
      %p344 = scmp.le.s32.totalorder 1, %s18
      %p345 = scmp.lt.s32.totalorder %s18, 3
      %p346 = pnand %p344, %p345
      %p347 = pneg %p346
      // Predicated region
      $region53: #{_lambda_.1} parent=5 // pred_check
        _
      $region54: #{_lambda_.1} parent=5 // pred_check_branch
        %349 = sbr.rel (%p346) target = $region56
      $region55: #{_lambda_.1} parent=5 // pred_region
        %s350 = ssub.s32 %s18, 1
        // Predicated region
        $region57: #{_lambda_.1} parent=55 // pred_check
          %p351 = pneg %p91
        $region58: #{_lambda_.1} parent=55 // pred_check_branch
          %353 = sbr.rel (%p351) target = $region60
        $region59: #{_lambda_.1} parent=55 // pred_region
          %354 = dma.done [#allocation3], 512
        $region60: #{_lambda_.1} parent=55 // pred_fallthru
          _
        // Predicated region
        $region61: #{_lambda_.1} parent=55 // pred_check
          %p355 = pneg %p112
        $region62: #{_lambda_.1} parent=55 // pred_check_branch
          %357 = sbr.rel (%p355) target = $region64
        $region63: #{_lambda_.1} parent=55 // pred_region
          %358 = dma.done [#allocation5], 128
        $region64: #{_lambda_.1} parent=55 // pred_fallthru
          _
        // Predicated region
        $region65: #{_lambda_.1} parent=55 // pred_check
          %p359 = pneg %p154
        $region66: #{_lambda_.1} parent=55 // pred_check_branch
          %361 = sbr.rel (%p359) target = $region68
        $region67: #{_lambda_.1} parent=55 // pred_region
          %362 = dma.done [#allocation5], 512
        $region68: #{_lambda_.1} parent=55 // pred_fallthru
          _
        // Predicated region
        $region69: #{_lambda_.1} parent=55 // pred_check
          %p363 = pneg %p175
        $region70: #{_lambda_.1} parent=55 // pred_check_branch
          %365 = sbr.rel (%p363) target = $region72
        $region71: #{_lambda_.1} parent=55 // pred_region
          %366 = dma.done [#allocation8], 512
        $region72: #{_lambda_.1} parent=55 // pred_fallthru
          _
        // Predicated region
        $region73: #{_lambda_.1} parent=55 // pred_check
          %p367 = pneg %p196
        $region74: #{_lambda_.1} parent=55 // pred_check_branch
          %369 = sbr.rel (%p367) target = $region76
        $region75: #{_lambda_.1} parent=55 // pred_region
          %370 = dma.done [#allocation8], 1024
        $region76: #{_lambda_.1} parent=55 // pred_fallthru
          _
        %p371 = scmp.lt.s32.totalorder %s23, 1
        %s372 = scalar_select %p371, %s23, 1
        %s373 = smul.addr %s372, 8
        %s374 = scalar_lea.vmem %s0, %s373
        %p375 = pneg %p44
        %p376 = pneg %p41
        %p377 = scmp.lt.s32.totalorder %s23, 1
        %s378 = scalar_select %p377, %s23, 1
        %s379 = scalar_lea.vmem %s1, %s378
        %p380 = pneg %p70
        %p381 = pneg %p67
        %p382 = pneg %p91
        %p383 = pneg %p88
        %p384 = pneg %p112
        %p385 = pneg %p109
        %p386 = pneg %p133
        %p387 = pneg %p130
        %p388 = pneg %p154
        %p389 = pneg %p151
        %p390 = pneg %p175
        %p391 = pneg %p172
        %p392 = pneg %p196
        %p393 = pneg %p193
        %p394 = pneg %p217
        %p395 = pneg %p214
        %p396 = pneg %p243
        %p397 = pneg %p240
        %p398 = scmp.lt.s32.totalorder %s23, 1
        %s399 = scalar_select %p398, %s23, 1
        %s400 = smul.addr %s399, 8
        %s401 = scalar_lea.vmem %s9, %s400
        %p402 = scmp.lt.s32.totalorder %s23, 1
        %s403 = scalar_select %p402, %s23, 1
        %s404 = smul.addr %s403, 8
        %s405 = scalar_lea.vmem %s0, %s404
        %p406 = scmp.lt.s32.totalorder %s23, 1
        %s407 = scalar_select %p406, %s23, 1
        %s408 = scalar_lea.vmem %s1, %s407
        %p409 = scmp.lt.s32.totalorder %s23, 1
        %s410 = scalar_select %p409, %s23, 1
        %s411 = smul.addr %s410, 8
        %s412 = scalar_lea.vmem %s9, %s411
        %v414 = vld [vmem:[%s405] sm:$0xff]
        %v415 = vld [vmem:[#allocation4] sm:$0x1]
        %v416 = vld [vmem:[#allocation4 + $0x1] sm:$0x1]
        %vm417 = vcmask 261120
        %v418 = vsel %vm417, %v414, 0.0
        %419 = vadd.xlane.f32.xlu0 %v418
        %v420 = vpop.xlane.xlu0 %419
        %v421 = vrcp.pop 32.0
        %v422 = vmul.f32 %v420, %v421
        %v423 = vsub.f32 %v414, %v422
        %v424 = vmul.f32 %v423, %v423
        %v425 = vsel %vm417, %v424, 0.0
        %426 = vadd.xlane.f32.xlu0 %v425
        %v427 = vpop.xlane.xlu0 %426
        %v428 = vmul.f32 %v427, %v421
        %v429 = vadd.f32 %v428, 1e-12
        %v430 = vrsqrt.pop %v429
        %v431 = vmul.f32 %v423, %v430
        %v432 = vlaneseq
        %v433 = vshrl.u32 %v432, 7
        %v434 = vsub.s32 0, %v433
        %v435 = vrot.slane %v415, %v434
        %v436 = vmul.f32 %v431, %v435
        %v437 = vlaneseq
        %v438 = vshrl.u32 %v437, 7
        %v439 = vsub.s32 0, %v438
        %v440 = vrot.slane %v416, %v439
        %v441 = vadd.f32 %v436, %v440
        %v442 = vld [vmem:[%s408] sm:$0x1]
        %v443 = vpack.c.bf16 %v441, %v441
        %v444 = vld [vmem:[%s4] sm:$0xf]
        %v445 = vld [vmem:[%s4 + $0x4] sm:$0xf]
        %v446 = vld [vmem:[%s4 + $0x8] sm:$0xf]
        %v447 = vld [vmem:[%s4 + $0xc] sm:$0xf]
        %v448 = vld [vmem:[#allocation2] sm:$0x1]
        %v449 = vlaneseq
        %v450 = vshrl.u32 %v449, 7
        %v451 = vsub.s32 0, %v450
        %v452 = vrot.slane %v448, %v451
        %v457 = vunpack.c.l.b16 %v444
        %v458 = vunpack.c.l.b16 %v445
        %v459 = vunpack.c.l.b16 %v446
        %v460 = vunpack.c.l.b16 %v447
        %v461 = vpack.c.b16 %v458, %v457
        %v462 = vpack.c.b16 %v460, %v459
        %v466 = vsel %vm417, %v443, 0
        %468 = vmatprep.subr.bf16.mxu0 0
        %469 = vmatpush1.bf16.msra.mxu0 0
        %470 = vmatprep.subr.bf16.mxu0 0
        %471 = vmatpush1.bf16.msra.mxu0 0
        %472 = vmatprep.subr.bf16.mxu0 0
        %473 = vmatpush1.bf16.msra.mxu0 0
        %474 = vmatprep.subr.bf16.mxu0 0
        %475 = vmatpush1.bf16.msra.mxu0 0
        %476 = vmatprep.subr.bf16.mxu0 0
        %477 = vmatpush1.bf16.msra.mxu0 0
        %478 = vmatprep.subr.bf16.mxu0 0
        %479 = vmatpush1.bf16.msra.mxu0 0
        %480 = vmatprep.subr.bf16.mxu0 0
        %481 = vmatpush1.bf16.msra.mxu0 %v462
        %482 = vmatprep.subr.bf16.mxu0 0
        %483 = vmatpush1.bf16.msra.mxu0 %v461
        %484 = vmatprep.subr.bf16.mxu0 0
        %485 = vmatpush2.bf16.msra.mxu0 0
        %486 = vmatprep.subr.bf16.mxu0 0
        %487 = vmatpush2.bf16.msra.mxu0 0
        %488 = vmatprep.subr.bf16.mxu0 0
        %489 = vmatpush2.bf16.msra.mxu0 0
        %490 = vmatprep.subr.bf16.mxu0 0
        %491 = vmatpush2.bf16.msra.mxu0 0
        %492 = vmatprep.subr.bf16.mxu0 0
        %493 = vmatpush2.bf16.msra.mxu0 0
        %494 = vmatprep.subr.bf16.mxu0 0
        %495 = vmatpush2.bf16.msra.mxu0 0
        %496 = vmatprep.subr.bf16.mxu0 0
        %497 = vmatpush2.bf16.msra.mxu0 0
        %498 = vmatprep.subr.bf16.mxu0 0
        %499 = vmatpush2.bf16.msra.mxu0 0
        %500 = vmatprep.mubr.bf16.mxu0 0
        %501 = vmatmul.mubr.bf16.gmra.mxu0 %v466
        %v502 = vpop.f32.mrf.mxu0
        %v503 = vadd.f32 %v452, %v502
        %v504 = vpop.f32.mrf.mxu0
        %v505 = vpop.f32.mrf.mxu0
        %v506 = vpop.f32.mrf.mxu0
        %507 = vdwg.mxu0
        %s508 = scalar_lea.vmem %s4, 16
        %v509 = vld [vmem:[%s508] sm:$0xf]
        %v510 = vld [vmem:[%s508 + $0x4] sm:$0xf]
        %v511 = vld [vmem:[%s508 + $0x8] sm:$0xf]
        %v512 = vld [vmem:[%s508 + $0xc] sm:$0xf]
        %v517 = vunpack.c.l.b16 %v509
        %v518 = vunpack.c.l.b16 %v510
        %v519 = vunpack.c.l.b16 %v511
        %v520 = vunpack.c.l.b16 %v512
        %v521 = vpack.c.b16 %v518, %v517
        %v522 = vpack.c.b16 %v520, %v519
        %525 = vmatprep.subr.bf16.mxu0 0
        %526 = vmatpush1.bf16.msra.mxu0 0
        %527 = vmatprep.subr.bf16.mxu0 0
        %528 = vmatpush1.bf16.msra.mxu0 0
        %529 = vmatprep.subr.bf16.mxu0 0
        %530 = vmatpush1.bf16.msra.mxu0 0
        %531 = vmatprep.subr.bf16.mxu0 0
        %532 = vmatpush1.bf16.msra.mxu0 0
        %533 = vmatprep.subr.bf16.mxu0 0
        %534 = vmatpush1.bf16.msra.mxu0 0
        %535 = vmatprep.subr.bf16.mxu0 0
        %536 = vmatpush1.bf16.msra.mxu0 0
        %537 = vmatprep.subr.bf16.mxu0 0
        %538 = vmatpush1.bf16.msra.mxu0 %v522
        %539 = vmatprep.subr.bf16.mxu0 0
        %540 = vmatpush1.bf16.msra.mxu0 %v521
        %541 = vmatprep.subr.bf16.mxu0 0
        %542 = vmatpush2.bf16.msra.mxu0 0
        %543 = vmatprep.subr.bf16.mxu0 0
        %544 = vmatpush2.bf16.msra.mxu0 0
        %545 = vmatprep.subr.bf16.mxu0 0
        %546 = vmatpush2.bf16.msra.mxu0 0
        %547 = vmatprep.subr.bf16.mxu0 0
        %548 = vmatpush2.bf16.msra.mxu0 0
        %549 = vmatprep.subr.bf16.mxu0 0
        %550 = vmatpush2.bf16.msra.mxu0 0
        %551 = vmatprep.subr.bf16.mxu0 0
        %552 = vmatpush2.bf16.msra.mxu0 0
        %553 = vmatprep.subr.bf16.mxu0 0
        %554 = vmatpush2.bf16.msra.mxu0 0
        %555 = vmatprep.subr.bf16.mxu0 0
        %556 = vmatpush2.bf16.msra.mxu0 0
        %557 = vmatprep.mubr.bf16.mxu0 0
        %558 = vmatmul.mubr.bf16.gmra.mxu0 %v466
        %v559 = vpop.f32.mrf.mxu0
        %v560 = vadd.f32 0.0, %v559
        %v561 = vpop.f32.mrf.mxu0
        %v562 = vpop.f32.mrf.mxu0
        %v563 = vpop.f32.mrf.mxu0
        %564 = vdwg.mxu0
        %s565 = scalar_lea.vmem %s4, 32
        %v566 = vld [vmem:[%s565] sm:$0xf]
        %v567 = vld [vmem:[%s565 + $0x4] sm:$0xf]
        %v568 = vld [vmem:[%s565 + $0x8] sm:$0xf]
        %v569 = vld [vmem:[%s565 + $0xc] sm:$0xf]
        %v574 = vunpack.c.l.b16 %v566
        %v575 = vunpack.c.l.b16 %v567
        %v576 = vunpack.c.l.b16 %v568
        %v577 = vunpack.c.l.b16 %v569
        %v578 = vpack.c.b16 %v575, %v574
        %v579 = vpack.c.b16 %v577, %v576
        %582 = vmatprep.subr.bf16.mxu0 0
        %583 = vmatpush1.bf16.msra.mxu0 0
        %584 = vmatprep.subr.bf16.mxu0 0
        %585 = vmatpush1.bf16.msra.mxu0 0
        %586 = vmatprep.subr.bf16.mxu0 0
        %587 = vmatpush1.bf16.msra.mxu0 0
        %588 = vmatprep.subr.bf16.mxu0 0
        %589 = vmatpush1.bf16.msra.mxu0 0
        %590 = vmatprep.subr.bf16.mxu0 0
        %591 = vmatpush1.bf16.msra.mxu0 0
        %592 = vmatprep.subr.bf16.mxu0 0
        %593 = vmatpush1.bf16.msra.mxu0 0
        %594 = vmatprep.subr.bf16.mxu0 0
        %595 = vmatpush1.bf16.msra.mxu0 %v579
        %596 = vmatprep.subr.bf16.mxu0 0
        %597 = vmatpush1.bf16.msra.mxu0 %v578
        %598 = vmatprep.subr.bf16.mxu0 0
        %599 = vmatpush2.bf16.msra.mxu0 0
        %600 = vmatprep.subr.bf16.mxu0 0
        %601 = vmatpush2.bf16.msra.mxu0 0
        %602 = vmatprep.subr.bf16.mxu0 0
        %603 = vmatpush2.bf16.msra.mxu0 0
        %604 = vmatprep.subr.bf16.mxu0 0
        %605 = vmatpush2.bf16.msra.mxu0 0
        %606 = vmatprep.subr.bf16.mxu0 0
        %607 = vmatpush2.bf16.msra.mxu0 0
        %608 = vmatprep.subr.bf16.mxu0 0
        %609 = vmatpush2.bf16.msra.mxu0 0
        %610 = vmatprep.subr.bf16.mxu0 0
        %611 = vmatpush2.bf16.msra.mxu0 0
        %612 = vmatprep.subr.bf16.mxu0 0
        %613 = vmatpush2.bf16.msra.mxu0 0
        %614 = vmatprep.mubr.bf16.mxu0 0
        %615 = vmatmul.mubr.bf16.gmra.mxu0 %v466
        %v616 = vpop.f32.mrf.mxu0
        %v617 = vadd.f32 0.0, %v616
        %v618 = vpop.f32.mrf.mxu0
        %v619 = vpop.f32.mrf.mxu0
        %v620 = vpop.f32.mrf.mxu0
        %621 = vdwg.mxu0
        %v622 = vpack.c.bf16 %v503, %v503
        %v623 = vpack.c.bf16 %v560, %v560
        %v625 = vlaneseq
        %v626 = vshrl.u32 %v625, 7
        %v627 = vsub.s32 0, %v626
        %v628 = vrot.slane %v442, %v627
        %vm630 = vcmask 130048
        %v632 = vsel %vm630, %v622, 0
        %v635 = vsel %vm630, %v623, 0
        %637 = vmatprep.subr.bf16.mxu0 0
        %638 = vmatpush1.bf16.xpose.msra.mxu0 0
        %639 = vmatprep.subr.bf16.mxu0 0
        %640 = vmatpush1.bf16.xpose.msra.mxu0 0
        %641 = vmatprep.subr.bf16.mxu0 0
        %642 = vmatpush1.bf16.xpose.msra.mxu0 0
        %643 = vmatprep.subr.bf16.mxu0 0
        %644 = vmatpush1.bf16.xpose.msra.mxu0 0
        %645 = vmatprep.subr.bf16.mxu0 0
        %646 = vmatpush1.bf16.xpose.msra.mxu0 0
        %647 = vmatprep.subr.bf16.mxu0 0
        %648 = vmatpush1.bf16.xpose.msra.mxu0 0
        %649 = vmatprep.subr.bf16.mxu0 0
        %650 = vmatpush1.bf16.xpose.msra.mxu0 0
        %651 = vmatprep.subr.bf16.mxu0 0
        %652 = vmatpush1.bf16.xpose.msra.mxu0 %v635
        %653 = vmatprep.subr.bf16.mxu0 0
        %654 = vmatpush2.bf16.xpose.msra.mxu0 0
        %655 = vmatprep.subr.bf16.mxu0 0
        %656 = vmatpush2.bf16.xpose.msra.mxu0 0
        %657 = vmatprep.subr.bf16.mxu0 0
        %658 = vmatpush2.bf16.xpose.msra.mxu0 0
        %659 = vmatprep.subr.bf16.mxu0 0
        %660 = vmatpush2.bf16.xpose.msra.mxu0 0
        %661 = vmatprep.subr.bf16.mxu0 0
        %662 = vmatpush2.bf16.xpose.msra.mxu0 0
        %663 = vmatprep.subr.bf16.mxu0 0
        %664 = vmatpush2.bf16.xpose.msra.mxu0 0
        %665 = vmatprep.subr.bf16.mxu0 0
        %666 = vmatpush2.bf16.xpose.msra.mxu0 0
        %667 = vmatprep.subr.bf16.mxu0 0
        %668 = vmatpush2.bf16.xpose.msra.mxu0 0
        %669 = vmatprep.mubr.bf16.mxu0 0
        %670 = vmatmul.mubr.bf16.gmra.mxu0 %v632
        %v671 = vpop.f32.mrf.mxu0
        %v672 = vadd.f32 %v628, %v671
        %v673 = vpop.f32.mrf.mxu0
        %v674 = vpop.f32.mrf.mxu0
        %v675 = vpop.f32.mrf.mxu0
        %676 = vdwg.mxu0
        %v677 = vmul.f32 %v672, 1.442695
        %v678 = vpow.pop %v677
        %vm679 = vcmask 64512
        %v680 = vsel %vm679, %v678, 0.0
        %681 = vadd.xlane.f32.xlu0 %v680
        %v682 = vpop.xlane.xlu0 %681
        %v683 = vrcp.pop %v682
        %v684 = vmul.f32 %v678, %v683
        %v685 = vpack.c.bf16 %v684, %v684
        %v686 = vpack.c.bf16 %v617, %v617
        %v688 = vsel %vm679, %v685, 0
        %vm690 = vcmask 1043456
        %v692 = vsel %vm690, %v686, 0
        %694 = vmatprep.subr.bf16.mxu0 0
        %695 = vmatpush1.bf16.msra.mxu0 0
        %696 = vmatprep.subr.bf16.mxu0 0
        %697 = vmatpush1.bf16.msra.mxu0 0
        %698 = vmatprep.subr.bf16.mxu0 0
        %699 = vmatpush1.bf16.msra.mxu0 0
        %700 = vmatprep.subr.bf16.mxu0 0
        %701 = vmatpush1.bf16.msra.mxu0 0
        %702 = vmatprep.subr.bf16.mxu0 0
        %703 = vmatpush1.bf16.msra.mxu0 0
        %704 = vmatprep.subr.bf16.mxu0 0
        %705 = vmatpush1.bf16.msra.mxu0 0
        %706 = vmatprep.subr.bf16.mxu0 0
        %707 = vmatpush1.bf16.msra.mxu0 0
        %708 = vmatprep.subr.bf16.mxu0 0
        %709 = vmatpush1.bf16.msra.mxu0 %v692
        %710 = vmatprep.subr.bf16.mxu0 0
        %711 = vmatpush2.bf16.msra.mxu0 0
        %712 = vmatprep.subr.bf16.mxu0 0
        %713 = vmatpush2.bf16.msra.mxu0 0
        %714 = vmatprep.subr.bf16.mxu0 0
        %715 = vmatpush2.bf16.msra.mxu0 0
        %716 = vmatprep.subr.bf16.mxu0 0
        %717 = vmatpush2.bf16.msra.mxu0 0
        %718 = vmatprep.subr.bf16.mxu0 0
        %719 = vmatpush2.bf16.msra.mxu0 0
        %720 = vmatprep.subr.bf16.mxu0 0
        %721 = vmatpush2.bf16.msra.mxu0 0
        %722 = vmatprep.subr.bf16.mxu0 0
        %723 = vmatpush2.bf16.msra.mxu0 0
        %724 = vmatprep.subr.bf16.mxu0 0
        %725 = vmatpush2.bf16.msra.mxu0 0
        %726 = vmatprep.mubr.bf16.mxu0 0
        %727 = vmatmul.mubr.bf16.gmra.mxu0 %v688
        %v728 = vpop.f32.mrf.mxu0
        %v729 = vadd.f32 0.0, %v728
        %v730 = vpop.f32.mrf.mxu0
        %v731 = vpop.f32.mrf.mxu0
        %v732 = vpop.f32.mrf.mxu0
        %733 = vdwg.mxu0
        %s734 = scalar_lea.vmem %s4, 48
        %v735 = vld [vmem:[%s734] sm:$0xf]
        %v736 = vld [vmem:[%s734 + $0x4] sm:$0xf]
        %v737 = vld [vmem:[%s734 + $0x8] sm:$0xf]
        %v738 = vld [vmem:[%s734 + $0xc] sm:$0xf]
        %v739 = vld [vmem:[#allocation2 + $0x1] sm:$0x1]
        %v740 = vlaneseq
        %v741 = vshrl.u32 %v740, 7
        %v742 = vsub.s32 0, %v741
        %v743 = vrot.slane %v739, %v742
        %v748 = vunpack.c.l.b16 %v735
        %v749 = vunpack.c.l.b16 %v736
        %v750 = vunpack.c.l.b16 %v737
        %v751 = vunpack.c.l.b16 %v738
        %v752 = vpack.c.b16 %v749, %v748
        %v753 = vpack.c.b16 %v751, %v750
        %756 = vmatprep.subr.bf16.mxu0 0
        %757 = vmatpush1.bf16.msra.mxu0 0
        %758 = vmatprep.subr.bf16.mxu0 0
        %759 = vmatpush1.bf16.msra.mxu0 0
        %760 = vmatprep.subr.bf16.mxu0 0
        %761 = vmatpush1.bf16.msra.mxu0 0
        %762 = vmatprep.subr.bf16.mxu0 0
        %763 = vmatpush1.bf16.msra.mxu0 0
        %764 = vmatprep.subr.bf16.mxu0 0
        %765 = vmatpush1.bf16.msra.mxu0 0
        %766 = vmatprep.subr.bf16.mxu0 0
        %767 = vmatpush1.bf16.msra.mxu0 0
        %768 = vmatprep.subr.bf16.mxu0 0
        %769 = vmatpush1.bf16.msra.mxu0 %v753
        %770 = vmatprep.subr.bf16.mxu0 0
        %771 = vmatpush1.bf16.msra.mxu0 %v752
        %772 = vmatprep.subr.bf16.mxu0 0
        %773 = vmatpush2.bf16.msra.mxu0 0
        %774 = vmatprep.subr.bf16.mxu0 0
        %775 = vmatpush2.bf16.msra.mxu0 0
        %776 = vmatprep.subr.bf16.mxu0 0
        %777 = vmatpush2.bf16.msra.mxu0 0
        %778 = vmatprep.subr.bf16.mxu0 0
        %779 = vmatpush2.bf16.msra.mxu0 0
        %780 = vmatprep.subr.bf16.mxu0 0
        %781 = vmatpush2.bf16.msra.mxu0 0
        %782 = vmatprep.subr.bf16.mxu0 0
        %783 = vmatpush2.bf16.msra.mxu0 0
        %784 = vmatprep.subr.bf16.mxu0 0
        %785 = vmatpush2.bf16.msra.mxu0 0
        %786 = vmatprep.subr.bf16.mxu0 0
        %787 = vmatpush2.bf16.msra.mxu0 0
        %788 = vmatprep.mubr.bf16.mxu0 0
        %789 = vmatmul.mubr.bf16.gmra.mxu0 %v466
        %v790 = vpop.f32.mrf.mxu0
        %v791 = vadd.f32 %v743, %v790
        %v792 = vpop.f32.mrf.mxu0
        %v793 = vpop.f32.mrf.mxu0
        %v794 = vpop.f32.mrf.mxu0
        %795 = vdwg.mxu0
        %s796 = scalar_lea.vmem %s4, 64
        %v797 = vld [vmem:[%s796] sm:$0xf]
        %v798 = vld [vmem:[%s796 + $0x4] sm:$0xf]
        %v799 = vld [vmem:[%s796 + $0x8] sm:$0xf]
        %v800 = vld [vmem:[%s796 + $0xc] sm:$0xf]
        %v805 = vunpack.c.l.b16 %v797
        %v806 = vunpack.c.l.b16 %v798
        %v807 = vunpack.c.l.b16 %v799
        %v808 = vunpack.c.l.b16 %v800
        %v809 = vpack.c.b16 %v806, %v805
        %v810 = vpack.c.b16 %v808, %v807
        %813 = vmatprep.subr.bf16.mxu0 0
        %814 = vmatpush1.bf16.msra.mxu0 0
        %815 = vmatprep.subr.bf16.mxu0 0
        %816 = vmatpush1.bf16.msra.mxu0 0
        %817 = vmatprep.subr.bf16.mxu0 0
        %818 = vmatpush1.bf16.msra.mxu0 0
        %819 = vmatprep.subr.bf16.mxu0 0
        %820 = vmatpush1.bf16.msra.mxu0 0
        %821 = vmatprep.subr.bf16.mxu0 0
        %822 = vmatpush1.bf16.msra.mxu0 0
        %823 = vmatprep.subr.bf16.mxu0 0
        %824 = vmatpush1.bf16.msra.mxu0 0
        %825 = vmatprep.subr.bf16.mxu0 0
        %826 = vmatpush1.bf16.msra.mxu0 %v810
        %827 = vmatprep.subr.bf16.mxu0 0
        %828 = vmatpush1.bf16.msra.mxu0 %v809
        %829 = vmatprep.subr.bf16.mxu0 0
        %830 = vmatpush2.bf16.msra.mxu0 0
        %831 = vmatprep.subr.bf16.mxu0 0
        %832 = vmatpush2.bf16.msra.mxu0 0
        %833 = vmatprep.subr.bf16.mxu0 0
        %834 = vmatpush2.bf16.msra.mxu0 0
        %835 = vmatprep.subr.bf16.mxu0 0
        %836 = vmatpush2.bf16.msra.mxu0 0
        %837 = vmatprep.subr.bf16.mxu0 0
        %838 = vmatpush2.bf16.msra.mxu0 0
        %839 = vmatprep.subr.bf16.mxu0 0
        %840 = vmatpush2.bf16.msra.mxu0 0
        %841 = vmatprep.subr.bf16.mxu0 0
        %842 = vmatpush2.bf16.msra.mxu0 0
        %843 = vmatprep.subr.bf16.mxu0 0
        %844 = vmatpush2.bf16.msra.mxu0 0
        %845 = vmatprep.mubr.bf16.mxu0 0
        %846 = vmatmul.mubr.bf16.gmra.mxu0 %v466
        %v847 = vpop.f32.mrf.mxu0
        %v848 = vadd.f32 0.0, %v847
        %v849 = vpop.f32.mrf.mxu0
        %v850 = vpop.f32.mrf.mxu0
        %v851 = vpop.f32.mrf.mxu0
        %852 = vdwg.mxu0
        %s853 = scalar_lea.vmem %s4, 80
        %v854 = vld [vmem:[%s853] sm:$0xf]
        %v855 = vld [vmem:[%s853 + $0x4] sm:$0xf]
        %v856 = vld [vmem:[%s853 + $0x8] sm:$0xf]
        %v857 = vld [vmem:[%s853 + $0xc] sm:$0xf]
        %v862 = vunpack.c.l.b16 %v854
        %v863 = vunpack.c.l.b16 %v855
        %v864 = vunpack.c.l.b16 %v856
        %v865 = vunpack.c.l.b16 %v857
        %v866 = vpack.c.b16 %v863, %v862
        %v867 = vpack.c.b16 %v865, %v864
        %870 = vmatprep.subr.bf16.mxu0 0
        %871 = vmatpush1.bf16.msra.mxu0 0
        %872 = vmatprep.subr.bf16.mxu0 0
        %873 = vmatpush1.bf16.msra.mxu0 0
        %874 = vmatprep.subr.bf16.mxu0 0
        %875 = vmatpush1.bf16.msra.mxu0 0
        %876 = vmatprep.subr.bf16.mxu0 0
        %877 = vmatpush1.bf16.msra.mxu0 0
        %878 = vmatprep.subr.bf16.mxu0 0
        %879 = vmatpush1.bf16.msra.mxu0 0
        %880 = vmatprep.subr.bf16.mxu0 0
        %881 = vmatpush1.bf16.msra.mxu0 0
        %882 = vmatprep.subr.bf16.mxu0 0
        %883 = vmatpush1.bf16.msra.mxu0 %v867
        %884 = vmatprep.subr.bf16.mxu0 0
        %885 = vmatpush1.bf16.msra.mxu0 %v866
        %886 = vmatprep.subr.bf16.mxu0 0
        %887 = vmatpush2.bf16.msra.mxu0 0
        %888 = vmatprep.subr.bf16.mxu0 0
        %889 = vmatpush2.bf16.msra.mxu0 0
        %890 = vmatprep.subr.bf16.mxu0 0
        %891 = vmatpush2.bf16.msra.mxu0 0
        %892 = vmatprep.subr.bf16.mxu0 0
        %893 = vmatpush2.bf16.msra.mxu0 0
        %894 = vmatprep.subr.bf16.mxu0 0
        %895 = vmatpush2.bf16.msra.mxu0 0
        %896 = vmatprep.subr.bf16.mxu0 0
        %897 = vmatpush2.bf16.msra.mxu0 0
        %898 = vmatprep.subr.bf16.mxu0 0
        %899 = vmatpush2.bf16.msra.mxu0 0
        %900 = vmatprep.subr.bf16.mxu0 0
        %901 = vmatpush2.bf16.msra.mxu0 0
        %902 = vmatprep.mubr.bf16.mxu0 0
        %903 = vmatmul.mubr.bf16.gmra.mxu0 %v466
        %v904 = vpop.f32.mrf.mxu0
        %v905 = vadd.f32 0.0, %v904
        %v906 = vpop.f32.mrf.mxu0
        %v907 = vpop.f32.mrf.mxu0
        %v908 = vpop.f32.mrf.mxu0
        %909 = vdwg.mxu0
        %v910 = vpack.c.bf16 %v791, %v791
        %v911 = vpack.c.bf16 %v848, %v848
        %v913 = vsel %vm630, %v910, 0
        %v916 = vsel %vm630, %v911, 0
        %918 = vmatprep.subr.bf16.mxu0 0
        %919 = vmatpush1.bf16.xpose.msra.mxu0 0
        %920 = vmatprep.subr.bf16.mxu0 0
        %921 = vmatpush1.bf16.xpose.msra.mxu0 0
        %922 = vmatprep.subr.bf16.mxu0 0
        %923 = vmatpush1.bf16.xpose.msra.mxu0 0
        %924 = vmatprep.subr.bf16.mxu0 0
        %925 = vmatpush1.bf16.xpose.msra.mxu0 0
        %926 = vmatprep.subr.bf16.mxu0 0
        %927 = vmatpush1.bf16.xpose.msra.mxu0 0
        %928 = vmatprep.subr.bf16.mxu0 0
        %929 = vmatpush1.bf16.xpose.msra.mxu0 0
        %930 = vmatprep.subr.bf16.mxu0 0
        %931 = vmatpush1.bf16.xpose.msra.mxu0 0
        %932 = vmatprep.subr.bf16.mxu0 0
        %933 = vmatpush1.bf16.xpose.msra.mxu0 %v916
        %934 = vmatprep.subr.bf16.mxu0 0
        %935 = vmatpush2.bf16.xpose.msra.mxu0 0
        %936 = vmatprep.subr.bf16.mxu0 0
        %937 = vmatpush2.bf16.xpose.msra.mxu0 0
        %938 = vmatprep.subr.bf16.mxu0 0
        %939 = vmatpush2.bf16.xpose.msra.mxu0 0
        %940 = vmatprep.subr.bf16.mxu0 0
        %941 = vmatpush2.bf16.xpose.msra.mxu0 0
        %942 = vmatprep.subr.bf16.mxu0 0
        %943 = vmatpush2.bf16.xpose.msra.mxu0 0
        %944 = vmatprep.subr.bf16.mxu0 0
        %945 = vmatpush2.bf16.xpose.msra.mxu0 0
        %946 = vmatprep.subr.bf16.mxu0 0
        %947 = vmatpush2.bf16.xpose.msra.mxu0 0
        %948 = vmatprep.subr.bf16.mxu0 0
        %949 = vmatpush2.bf16.xpose.msra.mxu0 0
        %950 = vmatprep.mubr.bf16.mxu0 0
        %951 = vmatmul.mubr.bf16.gmra.mxu0 %v913
        %v952 = vpop.f32.mrf.mxu0
        %v953 = vadd.f32 %v628, %v952
        %v954 = vpop.f32.mrf.mxu0
        %v955 = vpop.f32.mrf.mxu0
        %v956 = vpop.f32.mrf.mxu0
        %957 = vdwg.mxu0
        %v958 = vmul.f32 %v953, 1.442695
        %v959 = vpow.pop %v958
        %v960 = vsel %vm679, %v959, 0.0
        %961 = vadd.xlane.f32.xlu0 %v960
        %v962 = vpop.xlane.xlu0 %961
        %v963 = vrcp.pop %v962
        %v964 = vmul.f32 %v959, %v963
        %v965 = vpack.c.bf16 %v964, %v964
        %v966 = vpack.c.bf16 %v905, %v905
        %v968 = vsel %vm679, %v965, 0
        %v971 = vsel %vm690, %v966, 0
        %973 = vmatprep.subr.bf16.mxu0 0
        %974 = vmatpush1.bf16.msra.mxu0 0
        %975 = vmatprep.subr.bf16.mxu0 0
        %976 = vmatpush1.bf16.msra.mxu0 0
        %977 = vmatprep.subr.bf16.mxu0 0
        %978 = vmatpush1.bf16.msra.mxu0 0
        %979 = vmatprep.subr.bf16.mxu0 0
        %980 = vmatpush1.bf16.msra.mxu0 0
        %981 = vmatprep.subr.bf16.mxu0 0
        %982 = vmatpush1.bf16.msra.mxu0 0
        %983 = vmatprep.subr.bf16.mxu0 0
        %984 = vmatpush1.bf16.msra.mxu0 0
        %985 = vmatprep.subr.bf16.mxu0 0
        %986 = vmatpush1.bf16.msra.mxu0 0
        %987 = vmatprep.subr.bf16.mxu0 0
        %988 = vmatpush1.bf16.msra.mxu0 %v971
        %989 = vmatprep.subr.bf16.mxu0 0
        %990 = vmatpush2.bf16.msra.mxu0 0
        %991 = vmatprep.subr.bf16.mxu0 0
        %992 = vmatpush2.bf16.msra.mxu0 0
        %993 = vmatprep.subr.bf16.mxu0 0
        %994 = vmatpush2.bf16.msra.mxu0 0
        %995 = vmatprep.subr.bf16.mxu0 0
        %996 = vmatpush2.bf16.msra.mxu0 0
        %997 = vmatprep.subr.bf16.mxu0 0
        %998 = vmatpush2.bf16.msra.mxu0 0
        %999 = vmatprep.subr.bf16.mxu0 0
        %1000 = vmatpush2.bf16.msra.mxu0 0
        %1001 = vmatprep.subr.bf16.mxu0 0
        %1002 = vmatpush2.bf16.msra.mxu0 0
        %1003 = vmatprep.subr.bf16.mxu0 0
        %1004 = vmatpush2.bf16.msra.mxu0 0
        %1005 = vmatprep.mubr.bf16.mxu0 0
        %1006 = vmatmul.mubr.bf16.gmra.mxu0 %v968
        %v1007 = vpop.f32.mrf.mxu0
        %v1008 = vadd.f32 0.0, %v1007
        %v1009 = vpop.f32.mrf.mxu0
        %v1010 = vpop.f32.mrf.mxu0
        %v1011 = vpop.f32.mrf.mxu0
        %1012 = vdwg.mxu0
        %1014 = vrot.lane.b32.xlu0 %v1008, 16
        %v1015 = vpop.permute.xlu0 %1014
        %v1017 = vsel %vm630, %v729, %v1015
        %v1018 = vpack.c.bf16 %v1017, %v1017
        %v1019 = vld [vmem:[#allocation6] sm:$0xf]
        %v1020 = vld [vmem:[#allocation6 + $0x4] sm:$0xf]
        %v1021 = vld [vmem:[#allocation6 + $0x8] sm:$0xf]
        %v1022 = vld [vmem:[#allocation6 + $0xc] sm:$0xf]
        %v1023 = vld [vmem:[#allocation2 + $0x2] sm:$0x1]
        %v1024 = vlaneseq
        %v1025 = vshrl.u32 %v1024, 7
        %v1026 = vsub.s32 0, %v1025
        %v1027 = vrot.slane %v1023, %v1026
        %v1032 = vunpack.c.l.b16 %v1019
        %v1033 = vunpack.c.l.b16 %v1020
        %v1034 = vunpack.c.l.b16 %v1021
        %v1035 = vunpack.c.l.b16 %v1022
        %v1036 = vpack.c.b16 %v1033, %v1032
        %v1037 = vpack.c.b16 %v1035, %v1034
        %v1041 = vsel %vm417, %v1018, 0
        %1043 = vmatprep.subr.bf16.mxu0 0
        %1044 = vmatpush1.bf16.msra.mxu0 0
        %1045 = vmatprep.subr.bf16.mxu0 0
        %1046 = vmatpush1.bf16.msra.mxu0 0
        %1047 = vmatprep.subr.bf16.mxu0 0
        %1048 = vmatpush1.bf16.msra.mxu0 0
        %1049 = vmatprep.subr.bf16.mxu0 0
        %1050 = vmatpush1.bf16.msra.mxu0 0
        %1051 = vmatprep.subr.bf16.mxu0 0
        %1052 = vmatpush1.bf16.msra.mxu0 0
        %1053 = vmatprep.subr.bf16.mxu0 0
        %1054 = vmatpush1.bf16.msra.mxu0 0
        %1055 = vmatprep.subr.bf16.mxu0 0
        %1056 = vmatpush1.bf16.msra.mxu0 %v1037
        %1057 = vmatprep.subr.bf16.mxu0 0
        %1058 = vmatpush1.bf16.msra.mxu0 %v1036
        %1059 = vmatprep.subr.bf16.mxu0 0
        %1060 = vmatpush2.bf16.msra.mxu0 0
        %1061 = vmatprep.subr.bf16.mxu0 0
        %1062 = vmatpush2.bf16.msra.mxu0 0
        %1063 = vmatprep.subr.bf16.mxu0 0
        %1064 = vmatpush2.bf16.msra.mxu0 0
        %1065 = vmatprep.subr.bf16.mxu0 0
        %1066 = vmatpush2.bf16.msra.mxu0 0
        %1067 = vmatprep.subr.bf16.mxu0 0
        %1068 = vmatpush2.bf16.msra.mxu0 0
        %1069 = vmatprep.subr.bf16.mxu0 0
        %1070 = vmatpush2.bf16.msra.mxu0 0
        %1071 = vmatprep.subr.bf16.mxu0 0
        %1072 = vmatpush2.bf16.msra.mxu0 0
        %1073 = vmatprep.subr.bf16.mxu0 0
        %1074 = vmatpush2.bf16.msra.mxu0 0
        %1075 = vmatprep.mubr.bf16.mxu0 0
        %1076 = vmatmul.mubr.bf16.gmra.mxu0 %v1041
        %v1077 = vpop.f32.mrf.mxu0
        %v1078 = vadd.f32 %v1027, %v1077
        %v1079 = vpop.f32.mrf.mxu0
        %v1080 = vpop.f32.mrf.mxu0
        %v1081 = vpop.f32.mrf.mxu0
        %1082 = vdwg.mxu0
        %v1083 = vadd.f32 %v441, %v1078
        %v1084 = vld [vmem:[#allocation2 + $0x3] sm:$0x1]
        %v1085 = vld [vmem:[#allocation2 + $0x4] sm:$0x1]
        %v1086 = vsel %vm417, %v1083, 0.0
        %1087 = vadd.xlane.f32.xlu0 %v1086
        %v1088 = vpop.xlane.xlu0 %1087
        %v1089 = vmul.f32 %v1088, %v421
        %v1090 = vsub.f32 %v1083, %v1089
        %v1091 = vmul.f32 %v1090, %v1090
        %v1092 = vsel %vm417, %v1091, 0.0
        %1093 = vadd.xlane.f32.xlu0 %v1092
        %v1094 = vpop.xlane.xlu0 %1093
        %v1095 = vmul.f32 %v1094, %v421
        %v1096 = vadd.f32 %v1095, 1e-12
        %v1097 = vrsqrt.pop %v1096
        %v1098 = vmul.f32 %v1090, %v1097
        %v1099 = vlaneseq
        %v1100 = vshrl.u32 %v1099, 7
        %v1101 = vsub.s32 0, %v1100
        %v1102 = vrot.slane %v1084, %v1101
        %v1103 = vmul.f32 %v1098, %v1102
        %v1104 = vlaneseq
        %v1105 = vshrl.u32 %v1104, 7
        %v1106 = vsub.s32 0, %v1105
        %v1107 = vrot.slane %v1085, %v1106
        %v1108 = vadd.f32 %v1103, %v1107
        %v1109 = vpack.c.bf16 %v1108, %v1108
        %v1110 = vld [vmem:[#allocation7] sm:$0xf]
        %v1111 = vld [vmem:[#allocation7 + $0x4] sm:$0xf]
        %v1112 = vld [vmem:[#allocation7 + $0x8] sm:$0xf]
        %v1113 = vld [vmem:[#allocation7 + $0xc] sm:$0xf]
        %v1114 = vld [vmem:[#allocation2 + $0x5] sm:$0x1]
        %v1115 = vlaneseq
        %v1116 = vshrl.u32 %v1115, 7
        %v1117 = vsub.s32 0, %v1116
        %v1118 = vrot.slane %v1114, %v1117
        %v1123 = vunpack.c.l.b16 %v1110
        %v1124 = vunpack.c.l.b16 %v1111
        %v1125 = vunpack.c.l.b16 %v1112
        %v1126 = vunpack.c.l.b16 %v1113
        %v1127 = vpack.c.b16 %v1124, %v1123
        %v1128 = vpack.c.b16 %v1126, %v1125
        %v1132 = vsel %vm417, %v1109, 0
        %1134 = vmatprep.subr.bf16.mxu0 0
        %1135 = vmatpush1.bf16.msra.mxu0 0
        %1136 = vmatprep.subr.bf16.mxu0 0
        %1137 = vmatpush1.bf16.msra.mxu0 0
        %1138 = vmatprep.subr.bf16.mxu0 0
        %1139 = vmatpush1.bf16.msra.mxu0 0
        %1140 = vmatprep.subr.bf16.mxu0 0
        %1141 = vmatpush1.bf16.msra.mxu0 0
        %1142 = vmatprep.subr.bf16.mxu0 0
        %1143 = vmatpush1.bf16.msra.mxu0 0
        %1144 = vmatprep.subr.bf16.mxu0 0
        %1145 = vmatpush1.bf16.msra.mxu0 0
        %1146 = vmatprep.subr.bf16.mxu0 0
        %1147 = vmatpush1.bf16.msra.mxu0 %v1128
        %1148 = vmatprep.subr.bf16.mxu0 0
        %1149 = vmatpush1.bf16.msra.mxu0 %v1127
        %1150 = vmatprep.subr.bf16.mxu0 0
        %1151 = vmatpush2.bf16.msra.mxu0 0
        %1152 = vmatprep.subr.bf16.mxu0 0
        %1153 = vmatpush2.bf16.msra.mxu0 0
        %1154 = vmatprep.subr.bf16.mxu0 0
        %1155 = vmatpush2.bf16.msra.mxu0 0
        %1156 = vmatprep.subr.bf16.mxu0 0
        %1157 = vmatpush2.bf16.msra.mxu0 0
        %1158 = vmatprep.subr.bf16.mxu0 0
        %1159 = vmatpush2.bf16.msra.mxu0 0
        %1160 = vmatprep.subr.bf16.mxu0 0
        %1161 = vmatpush2.bf16.msra.mxu0 0
        %1162 = vmatprep.subr.bf16.mxu0 0
        %1163 = vmatpush2.bf16.msra.mxu0 0
        %1164 = vmatprep.subr.bf16.mxu0 0
        %1165 = vmatpush2.bf16.msra.mxu0 0
        %1166 = vmatprep.mubr.bf16.mxu0 0
        %1167 = vmatmul.mubr.bf16.gmra.mxu0 %v1132
        %v1168 = vpop.f32.mrf.mxu0
        %v1169 = vadd.f32 %v1118, %v1168
        %v1170 = vpop.f32.mrf.mxu0
        %v1171 = vpop.f32.mrf.mxu0
        %v1172 = vpop.f32.mrf.mxu0
        %1173 = vdwg.mxu0
        %v1174 = vmul.f32 %v1169, 0.5
        %v1175 = vmul.f32 %v1169, 0.044715
        %v1176 = vmul.f32 %v1175, %v1169
        %v1177 = vmul.f32 %v1176, %v1169
        %v1178 = vadd.f32 %v1169, %v1177
        %v1179 = vmul.f32 %v1178, 0.7978846
        %v1180 = vtanh.pop %v1179
        %v1181 = vadd.f32 %v1180, 1.0
        %v1182 = vmul.f32 %v1174, %v1181
        %v1183 = vpack.c.bf16 %v1182, %v1182
        %v1184 = vld [vmem:[#allocation9] sm:$0xf]
        %v1185 = vld [vmem:[#allocation9 + $0x4] sm:$0xf]
        %v1186 = vld [vmem:[#allocation9 + $0x8] sm:$0xf]
        %v1187 = vld [vmem:[#allocation9 + $0xc] sm:$0xf]
        %v1188 = vld [vmem:[#allocation9 + $0x10] sm:$0xf]
        %v1189 = vld [vmem:[#allocation9 + $0x14] sm:$0xf]
        %v1190 = vld [vmem:[#allocation9 + $0x18] sm:$0xf]
        %v1191 = vld [vmem:[#allocation9 + $0x1c] sm:$0xf]
        %v1192 = vld [vmem:[#allocation2 + $0x6] sm:$0x1]
        %v1193 = vlaneseq
        %v1194 = vshrl.u32 %v1193, 7
        %v1195 = vsub.s32 0, %v1194
        %v1196 = vrot.slane %v1192, %v1195
        %v1205 = vunpack.c.l.b16 %v1184
        %v1206 = vunpack.c.l.b16 %v1185
        %v1207 = vunpack.c.l.b16 %v1186
        %v1208 = vunpack.c.l.b16 %v1187
        %v1209 = vunpack.c.l.b16 %v1188
        %v1210 = vunpack.c.l.b16 %v1189
        %v1211 = vunpack.c.l.b16 %v1190
        %v1212 = vunpack.c.l.b16 %v1191
        %v1213 = vpack.c.b16 %v1206, %v1205
        %v1214 = vpack.c.b16 %v1208, %v1207
        %v1215 = vpack.c.b16 %v1210, %v1209
        %v1216 = vpack.c.b16 %v1212, %v1211
        %vm1221 = vcmask 523264
        %v1223 = vsel %vm1221, %v1183, 0
        %1225 = vmatprep.subr.bf16.mxu0 0
        %1226 = vmatpush1.bf16.msra.mxu0 0
        %1227 = vmatprep.subr.bf16.mxu0 0
        %1228 = vmatpush1.bf16.msra.mxu0 0
        %1229 = vmatprep.subr.bf16.mxu0 0
        %1230 = vmatpush1.bf16.msra.mxu0 0
        %1231 = vmatprep.subr.bf16.mxu0 0
        %1232 = vmatpush1.bf16.msra.mxu0 0
        %1233 = vmatprep.subr.bf16.mxu0 0
        %1234 = vmatpush1.bf16.msra.mxu0 %v1216
        %1235 = vmatprep.subr.bf16.mxu0 0
        %1236 = vmatpush1.bf16.msra.mxu0 %v1215
        %1237 = vmatprep.subr.bf16.mxu0 0
        %1238 = vmatpush1.bf16.msra.mxu0 %v1214
        %1239 = vmatprep.subr.bf16.mxu0 0
        %1240 = vmatpush1.bf16.msra.mxu0 %v1213
        %1241 = vmatprep.subr.bf16.mxu0 0
        %1242 = vmatpush2.bf16.msra.mxu0 0
        %1243 = vmatprep.subr.bf16.mxu0 0
        %1244 = vmatpush2.bf16.msra.mxu0 0
        %1245 = vmatprep.subr.bf16.mxu0 0
        %1246 = vmatpush2.bf16.msra.mxu0 0
        %1247 = vmatprep.subr.bf16.mxu0 0
        %1248 = vmatpush2.bf16.msra.mxu0 0
        %1249 = vmatprep.subr.bf16.mxu0 0
        %1250 = vmatpush2.bf16.msra.mxu0 0
        %1251 = vmatprep.subr.bf16.mxu0 0
        %1252 = vmatpush2.bf16.msra.mxu0 0
        %1253 = vmatprep.subr.bf16.mxu0 0
        %1254 = vmatpush2.bf16.msra.mxu0 0
        %1255 = vmatprep.subr.bf16.mxu0 0
        %1256 = vmatpush2.bf16.msra.mxu0 0
        %1257 = vmatprep.mubr.bf16.mxu0 0
        %1258 = vmatmul.mubr.bf16.gmra.mxu0 %v1223
        %v1259 = vpop.f32.mrf.mxu0
        %v1260 = vadd.f32 %v1196, %v1259
        %v1261 = vpop.f32.mrf.mxu0
        %v1262 = vpop.f32.mrf.mxu0
        %v1263 = vpop.f32.mrf.mxu0
        %1264 = vdwg.mxu0
        %v1265 = vadd.f32 %v1108, %v1260
        %v1266 = vld [vmem:[#allocation2 + $0x7] sm:$0x1]
        %v1267 = vld [vmem:[#allocation2 + $0x8] sm:$0x1]
        %v1268 = vsel %vm417, %v1265, 0.0
        %1269 = vadd.xlane.f32.xlu0 %v1268
        %v1270 = vpop.xlane.xlu0 %1269
        %v1271 = vmul.f32 %v1270, %v421
        %v1272 = vsub.f32 %v1265, %v1271
        %v1273 = vmul.f32 %v1272, %v1272
        %v1274 = vsel %vm417, %v1273, 0.0
        %1275 = vadd.xlane.f32.xlu0 %v1274
        %v1276 = vpop.xlane.xlu0 %1275
        %v1277 = vmul.f32 %v1276, %v421
        %v1278 = vadd.f32 %v1277, 1e-12
        %v1279 = vrsqrt.pop %v1278
        %v1280 = vmul.f32 %v1272, %v1279
        %v1281 = vlaneseq
        %v1282 = vshrl.u32 %v1281, 7
        %v1283 = vsub.s32 0, %v1282
        %v1284 = vrot.slane %v1266, %v1283
        %v1285 = vmul.f32 %v1280, %v1284
        %v1286 = vlaneseq
        %v1287 = vshrl.u32 %v1286, 7
        %v1288 = vsub.s32 0, %v1287
        %v1289 = vrot.slane %v1267, %v1288
        %v1290 = vadd.f32 %v1285, %v1289
        %v1291 = vpack.c.bf16 %v1290, %v1290
        %s1292 = scalar_lea.vmem %s4, 96
        %v1293 = vld [vmem:[%s1292] sm:$0xf]
        %v1294 = vld [vmem:[%s1292 + $0x4] sm:$0xf]
        %v1295 = vld [vmem:[%s1292 + $0x8] sm:$0xf]
        %v1296 = vld [vmem:[%s1292 + $0xc] sm:$0xf]
        %s1297 = scalar_lea.vmem [#allocation2], 16
        %v1298 = vld [vmem:[%s1297] sm:$0x1]
        %v1299 = vlaneseq
        %v1300 = vshrl.u32 %v1299, 7
        %v1301 = vsub.s32 0, %v1300
        %v1302 = vrot.slane %v1298, %v1301
        %v1307 = vunpack.c.l.b16 %v1293
        %v1308 = vunpack.c.l.b16 %v1294
        %v1309 = vunpack.c.l.b16 %v1295
        %v1310 = vunpack.c.l.b16 %v1296
        %v1311 = vpack.c.b16 %v1308, %v1307
        %v1312 = vpack.c.b16 %v1310, %v1309
        %v1316 = vsel %vm417, %v1291, 0
        %1318 = vmatprep.subr.bf16.mxu0 0
        %1319 = vmatpush1.bf16.msra.mxu0 0
        %1320 = vmatprep.subr.bf16.mxu0 0
        %1321 = vmatpush1.bf16.msra.mxu0 0
        %1322 = vmatprep.subr.bf16.mxu0 0
        %1323 = vmatpush1.bf16.msra.mxu0 0
        %1324 = vmatprep.subr.bf16.mxu0 0
        %1325 = vmatpush1.bf16.msra.mxu0 0
        %1326 = vmatprep.subr.bf16.mxu0 0
        %1327 = vmatpush1.bf16.msra.mxu0 0
        %1328 = vmatprep.subr.bf16.mxu0 0
        %1329 = vmatpush1.bf16.msra.mxu0 0
        %1330 = vmatprep.subr.bf16.mxu0 0
        %1331 = vmatpush1.bf16.msra.mxu0 %v1312
        %1332 = vmatprep.subr.bf16.mxu0 0
        %1333 = vmatpush1.bf16.msra.mxu0 %v1311
        %1334 = vmatprep.subr.bf16.mxu0 0
        %1335 = vmatpush2.bf16.msra.mxu0 0
        %1336 = vmatprep.subr.bf16.mxu0 0
        %1337 = vmatpush2.bf16.msra.mxu0 0
        %1338 = vmatprep.subr.bf16.mxu0 0
        %1339 = vmatpush2.bf16.msra.mxu0 0
        %1340 = vmatprep.subr.bf16.mxu0 0
        %1341 = vmatpush2.bf16.msra.mxu0 0
        %1342 = vmatprep.subr.bf16.mxu0 0
        %1343 = vmatpush2.bf16.msra.mxu0 0
        %1344 = vmatprep.subr.bf16.mxu0 0
        %1345 = vmatpush2.bf16.msra.mxu0 0
        %1346 = vmatprep.subr.bf16.mxu0 0
        %1347 = vmatpush2.bf16.msra.mxu0 0
        %1348 = vmatprep.subr.bf16.mxu0 0
        %1349 = vmatpush2.bf16.msra.mxu0 0
        %1350 = vmatprep.mubr.bf16.mxu0 0
        %1351 = vmatmul.mubr.bf16.gmra.mxu0 %v1316
        %v1352 = vpop.f32.mrf.mxu0
        %v1353 = vadd.f32 %v1302, %v1352
        %v1354 = vpop.f32.mrf.mxu0
        %v1355 = vpop.f32.mrf.mxu0
        %v1356 = vpop.f32.mrf.mxu0
        %1357 = vdwg.mxu0
        %s1358 = scalar_lea.vmem %s4, 112
        %v1359 = vld [vmem:[%s1358] sm:$0xf]
        %v1360 = vld [vmem:[%s1358 + $0x4] sm:$0xf]
        %v1361 = vld [vmem:[%s1358 + $0x8] sm:$0xf]
        %v1362 = vld [vmem:[%s1358 + $0xc] sm:$0xf]
        %v1367 = vunpack.c.l.b16 %v1359
        %v1368 = vunpack.c.l.b16 %v1360
        %v1369 = vunpack.c.l.b16 %v1361
        %v1370 = vunpack.c.l.b16 %v1362
        %v1371 = vpack.c.b16 %v1368, %v1367
        %v1372 = vpack.c.b16 %v1370, %v1369
        %1375 = vmatprep.subr.bf16.mxu0 0
        %1376 = vmatpush1.bf16.msra.mxu0 0
        %1377 = vmatprep.subr.bf16.mxu0 0
        %1378 = vmatpush1.bf16.msra.mxu0 0
        %1379 = vmatprep.subr.bf16.mxu0 0
        %1380 = vmatpush1.bf16.msra.mxu0 0
        %1381 = vmatprep.subr.bf16.mxu0 0
        %1382 = vmatpush1.bf16.msra.mxu0 0
        %1383 = vmatprep.subr.bf16.mxu0 0
        %1384 = vmatpush1.bf16.msra.mxu0 0
        %1385 = vmatprep.subr.bf16.mxu0 0
        %1386 = vmatpush1.bf16.msra.mxu0 0
        %1387 = vmatprep.subr.bf16.mxu0 0
        %1388 = vmatpush1.bf16.msra.mxu0 %v1372
        %1389 = vmatprep.subr.bf16.mxu0 0
        %1390 = vmatpush1.bf16.msra.mxu0 %v1371
        %1391 = vmatprep.subr.bf16.mxu0 0
        %1392 = vmatpush2.bf16.msra.mxu0 0
        %1393 = vmatprep.subr.bf16.mxu0 0
        %1394 = vmatpush2.bf16.msra.mxu0 0
        %1395 = vmatprep.subr.bf16.mxu0 0
        %1396 = vmatpush2.bf16.msra.mxu0 0
        %1397 = vmatprep.subr.bf16.mxu0 0
        %1398 = vmatpush2.bf16.msra.mxu0 0
        %1399 = vmatprep.subr.bf16.mxu0 0
        %1400 = vmatpush2.bf16.msra.mxu0 0
        %1401 = vmatprep.subr.bf16.mxu0 0
        %1402 = vmatpush2.bf16.msra.mxu0 0
        %1403 = vmatprep.subr.bf16.mxu0 0
        %1404 = vmatpush2.bf16.msra.mxu0 0
        %1405 = vmatprep.subr.bf16.mxu0 0
        %1406 = vmatpush2.bf16.msra.mxu0 0
        %1407 = vmatprep.mubr.bf16.mxu0 0
        %1408 = vmatmul.mubr.bf16.gmra.mxu0 %v1316
        %v1409 = vpop.f32.mrf.mxu0
        %v1410 = vadd.f32 0.0, %v1409
        %v1411 = vpop.f32.mrf.mxu0
        %v1412 = vpop.f32.mrf.mxu0
        %v1413 = vpop.f32.mrf.mxu0
        %1414 = vdwg.mxu0
        %s1415 = scalar_lea.vmem %s4, 128
        %v1416 = vld [vmem:[%s1415] sm:$0xf]
        %v1417 = vld [vmem:[%s1415 + $0x4] sm:$0xf]
        %v1418 = vld [vmem:[%s1415 + $0x8] sm:$0xf]
        %v1419 = vld [vmem:[%s1415 + $0xc] sm:$0xf]
        %v1424 = vunpack.c.l.b16 %v1416
        %v1425 = vunpack.c.l.b16 %v1417
        %v1426 = vunpack.c.l.b16 %v1418
        %v1427 = vunpack.c.l.b16 %v1419
        %v1428 = vpack.c.b16 %v1425, %v1424
        %v1429 = vpack.c.b16 %v1427, %v1426
        %1432 = vmatprep.subr.bf16.mxu0 0
        %1433 = vmatpush1.bf16.msra.mxu0 0
        %1434 = vmatprep.subr.bf16.mxu0 0
        %1435 = vmatpush1.bf16.msra.mxu0 0
        %1436 = vmatprep.subr.bf16.mxu0 0
        %1437 = vmatpush1.bf16.msra.mxu0 0
        %1438 = vmatprep.subr.bf16.mxu0 0
        %1439 = vmatpush1.bf16.msra.mxu0 0
        %1440 = vmatprep.subr.bf16.mxu0 0
        %1441 = vmatpush1.bf16.msra.mxu0 0
        %1442 = vmatprep.subr.bf16.mxu0 0
        %1443 = vmatpush1.bf16.msra.mxu0 0
        %1444 = vmatprep.subr.bf16.mxu0 0
        %1445 = vmatpush1.bf16.msra.mxu0 %v1429
        %1446 = vmatprep.subr.bf16.mxu0 0
        %1447 = vmatpush1.bf16.msra.mxu0 %v1428
        %1448 = vmatprep.subr.bf16.mxu0 0
        %1449 = vmatpush2.bf16.msra.mxu0 0
        %1450 = vmatprep.subr.bf16.mxu0 0
        %1451 = vmatpush2.bf16.msra.mxu0 0
        %1452 = vmatprep.subr.bf16.mxu0 0
        %1453 = vmatpush2.bf16.msra.mxu0 0
        %1454 = vmatprep.subr.bf16.mxu0 0
        %1455 = vmatpush2.bf16.msra.mxu0 0
        %1456 = vmatprep.subr.bf16.mxu0 0
        %1457 = vmatpush2.bf16.msra.mxu0 0
        %1458 = vmatprep.subr.bf16.mxu0 0
        %1459 = vmatpush2.bf16.msra.mxu0 0
        %1460 = vmatprep.subr.bf16.mxu0 0
        %1461 = vmatpush2.bf16.msra.mxu0 0
        %1462 = vmatprep.subr.bf16.mxu0 0
        %1463 = vmatpush2.bf16.msra.mxu0 0
        %1464 = vmatprep.mubr.bf16.mxu0 0
        %1465 = vmatmul.mubr.bf16.gmra.mxu0 %v1316
        %v1466 = vpop.f32.mrf.mxu0
        %v1467 = vadd.f32 0.0, %v1466
        %v1468 = vpop.f32.mrf.mxu0
        %v1469 = vpop.f32.mrf.mxu0
        %v1470 = vpop.f32.mrf.mxu0
        %1471 = vdwg.mxu0
        %v1472 = vpack.c.bf16 %v1353, %v1353
        %v1473 = vpack.c.bf16 %v1410, %v1410
        %v1475 = vsel %vm630, %v1472, 0
        %v1478 = vsel %vm630, %v1473, 0
        %1480 = vmatprep.subr.bf16.mxu0 0
        %1481 = vmatpush1.bf16.xpose.msra.mxu0 0
        %1482 = vmatprep.subr.bf16.mxu0 0
        %1483 = vmatpush1.bf16.xpose.msra.mxu0 0
        %1484 = vmatprep.subr.bf16.mxu0 0
        %1485 = vmatpush1.bf16.xpose.msra.mxu0 0
        %1486 = vmatprep.subr.bf16.mxu0 0
        %1487 = vmatpush1.bf16.xpose.msra.mxu0 0
        %1488 = vmatprep.subr.bf16.mxu0 0
        %1489 = vmatpush1.bf16.xpose.msra.mxu0 0
        %1490 = vmatprep.subr.bf16.mxu0 0
        %1491 = vmatpush1.bf16.xpose.msra.mxu0 0
        %1492 = vmatprep.subr.bf16.mxu0 0
        %1493 = vmatpush1.bf16.xpose.msra.mxu0 0
        %1494 = vmatprep.subr.bf16.mxu0 0
        %1495 = vmatpush1.bf16.xpose.msra.mxu0 %v1478
        %1496 = vmatprep.subr.bf16.mxu0 0
        %1497 = vmatpush2.bf16.xpose.msra.mxu0 0
        %1498 = vmatprep.subr.bf16.mxu0 0
        %1499 = vmatpush2.bf16.xpose.msra.mxu0 0
        %1500 = vmatprep.subr.bf16.mxu0 0
        %1501 = vmatpush2.bf16.xpose.msra.mxu0 0
        %1502 = vmatprep.subr.bf16.mxu0 0
        %1503 = vmatpush2.bf16.xpose.msra.mxu0 0
        %1504 = vmatprep.subr.bf16.mxu0 0
        %1505 = vmatpush2.bf16.xpose.msra.mxu0 0
        %1506 = vmatprep.subr.bf16.mxu0 0
        %1507 = vmatpush2.bf16.xpose.msra.mxu0 0
        %1508 = vmatprep.subr.bf16.mxu0 0
        %1509 = vmatpush2.bf16.xpose.msra.mxu0 0
        %1510 = vmatprep.subr.bf16.mxu0 0
        %1511 = vmatpush2.bf16.xpose.msra.mxu0 0
        %1512 = vmatprep.mubr.bf16.mxu0 0
        %1513 = vmatmul.mubr.bf16.gmra.mxu0 %v1475
        %v1514 = vpop.f32.mrf.mxu0
        %v1515 = vadd.f32 %v628, %v1514
        %v1516 = vpop.f32.mrf.mxu0
        %v1517 = vpop.f32.mrf.mxu0
        %v1518 = vpop.f32.mrf.mxu0
        %1519 = vdwg.mxu0
        %v1520 = vmul.f32 %v1515, 1.442695
        %v1521 = vpow.pop %v1520
        %v1522 = vsel %vm679, %v1521, 0.0
        %1523 = vadd.xlane.f32.xlu0 %v1522
        %v1524 = vpop.xlane.xlu0 %1523
        %v1525 = vrcp.pop %v1524
        %v1526 = vmul.f32 %v1521, %v1525
        %v1527 = vpack.c.bf16 %v1526, %v1526
        %v1528 = vpack.c.bf16 %v1467, %v1467
        %v1530 = vsel %vm679, %v1527, 0
        %v1533 = vsel %vm690, %v1528, 0
        %1535 = vmatprep.subr.bf16.mxu0 0
        %1536 = vmatpush1.bf16.msra.mxu0 0
        %1537 = vmatprep.subr.bf16.mxu0 0
        %1538 = vmatpush1.bf16.msra.mxu0 0
        %1539 = vmatprep.subr.bf16.mxu0 0
        %1540 = vmatpush1.bf16.msra.mxu0 0
        %1541 = vmatprep.subr.bf16.mxu0 0
        %1542 = vmatpush1.bf16.msra.mxu0 0
        %1543 = vmatprep.subr.bf16.mxu0 0
        %1544 = vmatpush1.bf16.msra.mxu0 0
        %1545 = vmatprep.subr.bf16.mxu0 0
        %1546 = vmatpush1.bf16.msra.mxu0 0
        %1547 = vmatprep.subr.bf16.mxu0 0
        %1548 = vmatpush1.bf16.msra.mxu0 0
        %1549 = vmatprep.subr.bf16.mxu0 0
        %1550 = vmatpush1.bf16.msra.mxu0 %v1533
        %1551 = vmatprep.subr.bf16.mxu0 0
        %1552 = vmatpush2.bf16.msra.mxu0 0
        %1553 = vmatprep.subr.bf16.mxu0 0
        %1554 = vmatpush2.bf16.msra.mxu0 0
        %1555 = vmatprep.subr.bf16.mxu0 0
        %1556 = vmatpush2.bf16.msra.mxu0 0
        %1557 = vmatprep.subr.bf16.mxu0 0
        %1558 = vmatpush2.bf16.msra.mxu0 0
        %1559 = vmatprep.subr.bf16.mxu0 0
        %1560 = vmatpush2.bf16.msra.mxu0 0
        %1561 = vmatprep.subr.bf16.mxu0 0
        %1562 = vmatpush2.bf16.msra.mxu0 0
        %1563 = vmatprep.subr.bf16.mxu0 0
        %1564 = vmatpush2.bf16.msra.mxu0 0
        %1565 = vmatprep.subr.bf16.mxu0 0
        %1566 = vmatpush2.bf16.msra.mxu0 0
        %1567 = vmatprep.mubr.bf16.mxu0 0
        %1568 = vmatmul.mubr.bf16.gmra.mxu0 %v1530
        %v1569 = vpop.f32.mrf.mxu0
        %v1570 = vadd.f32 0.0, %v1569
        %v1571 = vpop.f32.mrf.mxu0
        %v1572 = vpop.f32.mrf.mxu0
        %v1573 = vpop.f32.mrf.mxu0
        %1574 = vdwg.mxu0
        %s1575 = scalar_lea.vmem %s4, 144
        %v1576 = vld [vmem:[%s1575] sm:$0xf]
        %v1577 = vld [vmem:[%s1575 + $0x4] sm:$0xf]
        %v1578 = vld [vmem:[%s1575 + $0x8] sm:$0xf]
        %v1579 = vld [vmem:[%s1575 + $0xc] sm:$0xf]
        %v1580 = vld [vmem:[%s1297 + $0x1] sm:$0x1]
        %v1581 = vlaneseq
        %v1582 = vshrl.u32 %v1581, 7
        %v1583 = vsub.s32 0, %v1582
        %v1584 = vrot.slane %v1580, %v1583
        %v1589 = vunpack.c.l.b16 %v1576
        %v1590 = vunpack.c.l.b16 %v1577
        %v1591 = vunpack.c.l.b16 %v1578
        %v1592 = vunpack.c.l.b16 %v1579
        %v1593 = vpack.c.b16 %v1590, %v1589
        %v1594 = vpack.c.b16 %v1592, %v1591
        %1597 = vmatprep.subr.bf16.mxu0 0
        %1598 = vmatpush1.bf16.msra.mxu0 0
        %1599 = vmatprep.subr.bf16.mxu0 0
        %1600 = vmatpush1.bf16.msra.mxu0 0
        %1601 = vmatprep.subr.bf16.mxu0 0
        %1602 = vmatpush1.bf16.msra.mxu0 0
        %1603 = vmatprep.subr.bf16.mxu0 0
        %1604 = vmatpush1.bf16.msra.mxu0 0
        %1605 = vmatprep.subr.bf16.mxu0 0
        %1606 = vmatpush1.bf16.msra.mxu0 0
        %1607 = vmatprep.subr.bf16.mxu0 0
        %1608 = vmatpush1.bf16.msra.mxu0 0
        %1609 = vmatprep.subr.bf16.mxu0 0
        %1610 = vmatpush1.bf16.msra.mxu0 %v1594
        %1611 = vmatprep.subr.bf16.mxu0 0
        %1612 = vmatpush1.bf16.msra.mxu0 %v1593
        %1613 = vmatprep.subr.bf16.mxu0 0
        %1614 = vmatpush2.bf16.msra.mxu0 0
        %1615 = vmatprep.subr.bf16.mxu0 0
        %1616 = vmatpush2.bf16.msra.mxu0 0
        %1617 = vmatprep.subr.bf16.mxu0 0
        %1618 = vmatpush2.bf16.msra.mxu0 0
        %1619 = vmatprep.subr.bf16.mxu0 0
        %1620 = vmatpush2.bf16.msra.mxu0 0
        %1621 = vmatprep.subr.bf16.mxu0 0
        %1622 = vmatpush2.bf16.msra.mxu0 0
        %1623 = vmatprep.subr.bf16.mxu0 0
        %1624 = vmatpush2.bf16.msra.mxu0 0
        %1625 = vmatprep.subr.bf16.mxu0 0
        %1626 = vmatpush2.bf16.msra.mxu0 0
        %1627 = vmatprep.subr.bf16.mxu0 0
        %1628 = vmatpush2.bf16.msra.mxu0 0
        %1629 = vmatprep.mubr.bf16.mxu0 0
        %1630 = vmatmul.mubr.bf16.gmra.mxu0 %v1316
        %v1631 = vpop.f32.mrf.mxu0
        %v1632 = vadd.f32 %v1584, %v1631
        %v1633 = vpop.f32.mrf.mxu0
        %v1634 = vpop.f32.mrf.mxu0
        %v1635 = vpop.f32.mrf.mxu0
        %1636 = vdwg.mxu0
        %s1637 = scalar_lea.vmem %s4, 160
        %v1638 = vld [vmem:[%s1637] sm:$0xf]
        %v1639 = vld [vmem:[%s1637 + $0x4] sm:$0xf]
        %v1640 = vld [vmem:[%s1637 + $0x8] sm:$0xf]
        %v1641 = vld [vmem:[%s1637 + $0xc] sm:$0xf]
        %v1646 = vunpack.c.l.b16 %v1638
        %v1647 = vunpack.c.l.b16 %v1639
        %v1648 = vunpack.c.l.b16 %v1640
        %v1649 = vunpack.c.l.b16 %v1641
        %v1650 = vpack.c.b16 %v1647, %v1646
        %v1651 = vpack.c.b16 %v1649, %v1648
        %1654 = vmatprep.subr.bf16.mxu0 0
        %1655 = vmatpush1.bf16.msra.mxu0 0
        %1656 = vmatprep.subr.bf16.mxu0 0
        %1657 = vmatpush1.bf16.msra.mxu0 0
        %1658 = vmatprep.subr.bf16.mxu0 0
        %1659 = vmatpush1.bf16.msra.mxu0 0
        %1660 = vmatprep.subr.bf16.mxu0 0
        %1661 = vmatpush1.bf16.msra.mxu0 0
        %1662 = vmatprep.subr.bf16.mxu0 0
        %1663 = vmatpush1.bf16.msra.mxu0 0
        %1664 = vmatprep.subr.bf16.mxu0 0
        %1665 = vmatpush1.bf16.msra.mxu0 0
        %1666 = vmatprep.subr.bf16.mxu0 0
        %1667 = vmatpush1.bf16.msra.mxu0 %v1651
        %1668 = vmatprep.subr.bf16.mxu0 0
        %1669 = vmatpush1.bf16.msra.mxu0 %v1650
        %1670 = vmatprep.subr.bf16.mxu0 0
        %1671 = vmatpush2.bf16.msra.mxu0 0
        %1672 = vmatprep.subr.bf16.mxu0 0
        %1673 = vmatpush2.bf16.msra.mxu0 0
        %1674 = vmatprep.subr.bf16.mxu0 0
        %1675 = vmatpush2.bf16.msra.mxu0 0
        %1676 = vmatprep.subr.bf16.mxu0 0
        %1677 = vmatpush2.bf16.msra.mxu0 0
        %1678 = vmatprep.subr.bf16.mxu0 0
        %1679 = vmatpush2.bf16.msra.mxu0 0
        %1680 = vmatprep.subr.bf16.mxu0 0
        %1681 = vmatpush2.bf16.msra.mxu0 0
        %1682 = vmatprep.subr.bf16.mxu0 0
        %1683 = vmatpush2.bf16.msra.mxu0 0
        %1684 = vmatprep.subr.bf16.mxu0 0
        %1685 = vmatpush2.bf16.msra.mxu0 0
        %1686 = vmatprep.mubr.bf16.mxu0 0
        %1687 = vmatmul.mubr.bf16.gmra.mxu0 %v1316
        %v1688 = vpop.f32.mrf.mxu0
        %v1689 = vadd.f32 0.0, %v1688
        %v1690 = vpop.f32.mrf.mxu0
        %v1691 = vpop.f32.mrf.mxu0
        %v1692 = vpop.f32.mrf.mxu0
        %1693 = vdwg.mxu0
        %s1694 = scalar_lea.vmem %s4, 176
        %v1695 = vld [vmem:[%s1694] sm:$0xf]
        %v1696 = vld [vmem:[%s1694 + $0x4] sm:$0xf]
        %v1697 = vld [vmem:[%s1694 + $0x8] sm:$0xf]
        %v1698 = vld [vmem:[%s1694 + $0xc] sm:$0xf]
        %v1703 = vunpack.c.l.b16 %v1695
        %v1704 = vunpack.c.l.b16 %v1696
        %v1705 = vunpack.c.l.b16 %v1697
        %v1706 = vunpack.c.l.b16 %v1698
        %v1707 = vpack.c.b16 %v1704, %v1703
        %v1708 = vpack.c.b16 %v1706, %v1705
        %1711 = vmatprep.subr.bf16.mxu0 0
        %1712 = vmatpush1.bf16.msra.mxu0 0
        %1713 = vmatprep.subr.bf16.mxu0 0
        %1714 = vmatpush1.bf16.msra.mxu0 0
        %1715 = vmatprep.subr.bf16.mxu0 0
        %1716 = vmatpush1.bf16.msra.mxu0 0
        %1717 = vmatprep.subr.bf16.mxu0 0
        %1718 = vmatpush1.bf16.msra.mxu0 0
        %1719 = vmatprep.subr.bf16.mxu0 0
        %1720 = vmatpush1.bf16.msra.mxu0 0
        %1721 = vmatprep.subr.bf16.mxu0 0
        %1722 = vmatpush1.bf16.msra.mxu0 0
        %1723 = vmatprep.subr.bf16.mxu0 0
        %1724 = vmatpush1.bf16.msra.mxu0 %v1708
        %1725 = vmatprep.subr.bf16.mxu0 0
        %1726 = vmatpush1.bf16.msra.mxu0 %v1707
        %1727 = vmatprep.subr.bf16.mxu0 0
        %1728 = vmatpush2.bf16.msra.mxu0 0
        %1729 = vmatprep.subr.bf16.mxu0 0
        %1730 = vmatpush2.bf16.msra.mxu0 0
        %1731 = vmatprep.subr.bf16.mxu0 0
        %1732 = vmatpush2.bf16.msra.mxu0 0
        %1733 = vmatprep.subr.bf16.mxu0 0
        %1734 = vmatpush2.bf16.msra.mxu0 0
        %1735 = vmatprep.subr.bf16.mxu0 0
        %1736 = vmatpush2.bf16.msra.mxu0 0
        %1737 = vmatprep.subr.bf16.mxu0 0
        %1738 = vmatpush2.bf16.msra.mxu0 0
        %1739 = vmatprep.subr.bf16.mxu0 0
        %1740 = vmatpush2.bf16.msra.mxu0 0
        %1741 = vmatprep.subr.bf16.mxu0 0
        %1742 = vmatpush2.bf16.msra.mxu0 0
        %1743 = vmatprep.mubr.bf16.mxu0 0
        %1744 = vmatmul.mubr.bf16.gmra.mxu0 %v1316
        %v1745 = vpop.f32.mrf.mxu0
        %v1746 = vadd.f32 0.0, %v1745
        %v1747 = vpop.f32.mrf.mxu0
        %v1748 = vpop.f32.mrf.mxu0
        %v1749 = vpop.f32.mrf.mxu0
        %1750 = vdwg.mxu0
        %v1751 = vpack.c.bf16 %v1632, %v1632
        %v1752 = vpack.c.bf16 %v1689, %v1689
        %v1754 = vsel %vm630, %v1751, 0
        %v1757 = vsel %vm630, %v1752, 0
        %1759 = vmatprep.subr.bf16.mxu0 0
        %1760 = vmatpush1.bf16.xpose.msra.mxu0 0
        %1761 = vmatprep.subr.bf16.mxu0 0
        %1762 = vmatpush1.bf16.xpose.msra.mxu0 0
        %1763 = vmatprep.subr.bf16.mxu0 0
        %1764 = vmatpush1.bf16.xpose.msra.mxu0 0
        %1765 = vmatprep.subr.bf16.mxu0 0
        %1766 = vmatpush1.bf16.xpose.msra.mxu0 0
        %1767 = vmatprep.subr.bf16.mxu0 0
        %1768 = vmatpush1.bf16.xpose.msra.mxu0 0
        %1769 = vmatprep.subr.bf16.mxu0 0
        %1770 = vmatpush1.bf16.xpose.msra.mxu0 0
        %1771 = vmatprep.subr.bf16.mxu0 0
        %1772 = vmatpush1.bf16.xpose.msra.mxu0 0
        %1773 = vmatprep.subr.bf16.mxu0 0
        %1774 = vmatpush1.bf16.xpose.msra.mxu0 %v1757
        %1775 = vmatprep.subr.bf16.mxu0 0
        %1776 = vmatpush2.bf16.xpose.msra.mxu0 0
        %1777 = vmatprep.subr.bf16.mxu0 0
        %1778 = vmatpush2.bf16.xpose.msra.mxu0 0
        %1779 = vmatprep.subr.bf16.mxu0 0
        %1780 = vmatpush2.bf16.xpose.msra.mxu0 0
        %1781 = vmatprep.subr.bf16.mxu0 0
        %1782 = vmatpush2.bf16.xpose.msra.mxu0 0
        %1783 = vmatprep.subr.bf16.mxu0 0
        %1784 = vmatpush2.bf16.xpose.msra.mxu0 0
        %1785 = vmatprep.subr.bf16.mxu0 0
        %1786 = vmatpush2.bf16.xpose.msra.mxu0 0
        %1787 = vmatprep.subr.bf16.mxu0 0
        %1788 = vmatpush2.bf16.xpose.msra.mxu0 0
        %1789 = vmatprep.subr.bf16.mxu0 0
        %1790 = vmatpush2.bf16.xpose.msra.mxu0 0
        %1791 = vmatprep.mubr.bf16.mxu0 0
        %1792 = vmatmul.mubr.bf16.gmra.mxu0 %v1754
        %v1793 = vpop.f32.mrf.mxu0
        %v1794 = vadd.f32 %v628, %v1793
        %v1795 = vpop.f32.mrf.mxu0
        %v1796 = vpop.f32.mrf.mxu0
        %v1797 = vpop.f32.mrf.mxu0
        %1798 = vdwg.mxu0
        %v1799 = vmul.f32 %v1794, 1.442695
        %v1800 = vpow.pop %v1799
        %v1801 = vsel %vm679, %v1800, 0.0
        %1802 = vadd.xlane.f32.xlu0 %v1801
        %v1803 = vpop.xlane.xlu0 %1802
        %v1804 = vrcp.pop %v1803
        %v1805 = vmul.f32 %v1800, %v1804
        %v1806 = vpack.c.bf16 %v1805, %v1805
        %v1807 = vpack.c.bf16 %v1746, %v1746
        %v1809 = vsel %vm679, %v1806, 0
        %v1812 = vsel %vm690, %v1807, 0
        %1814 = vmatprep.subr.bf16.mxu0 0
        %1815 = vmatpush1.bf16.msra.mxu0 0
        %1816 = vmatprep.subr.bf16.mxu0 0
        %1817 = vmatpush1.bf16.msra.mxu0 0
        %1818 = vmatprep.subr.bf16.mxu0 0
        %1819 = vmatpush1.bf16.msra.mxu0 0
        %1820 = vmatprep.subr.bf16.mxu0 0
        %1821 = vmatpush1.bf16.msra.mxu0 0
        %1822 = vmatprep.subr.bf16.mxu0 0
        %1823 = vmatpush1.bf16.msra.mxu0 0
        %1824 = vmatprep.subr.bf16.mxu0 0
        %1825 = vmatpush1.bf16.msra.mxu0 0
        %1826 = vmatprep.subr.bf16.mxu0 0
        %1827 = vmatpush1.bf16.msra.mxu0 0
        %1828 = vmatprep.subr.bf16.mxu0 0
        %1829 = vmatpush1.bf16.msra.mxu0 %v1812
        %1830 = vmatprep.subr.bf16.mxu0 0
        %1831 = vmatpush2.bf16.msra.mxu0 0
        %1832 = vmatprep.subr.bf16.mxu0 0
        %1833 = vmatpush2.bf16.msra.mxu0 0
        %1834 = vmatprep.subr.bf16.mxu0 0
        %1835 = vmatpush2.bf16.msra.mxu0 0
        %1836 = vmatprep.subr.bf16.mxu0 0
        %1837 = vmatpush2.bf16.msra.mxu0 0
        %1838 = vmatprep.subr.bf16.mxu0 0
        %1839 = vmatpush2.bf16.msra.mxu0 0
        %1840 = vmatprep.subr.bf16.mxu0 0
        %1841 = vmatpush2.bf16.msra.mxu0 0
        %1842 = vmatprep.subr.bf16.mxu0 0
        %1843 = vmatpush2.bf16.msra.mxu0 0
        %1844 = vmatprep.subr.bf16.mxu0 0
        %1845 = vmatpush2.bf16.msra.mxu0 0
        %1846 = vmatprep.mubr.bf16.mxu0 0
        %1847 = vmatmul.mubr.bf16.gmra.mxu0 %v1809
        %v1848 = vpop.f32.mrf.mxu0
        %v1849 = vadd.f32 0.0, %v1848
        %v1850 = vpop.f32.mrf.mxu0
        %v1851 = vpop.f32.mrf.mxu0
        %v1852 = vpop.f32.mrf.mxu0
        %1853 = vdwg.mxu0
        %1855 = vrot.lane.b32.xlu0 %v1849, 16
        %v1856 = vpop.permute.xlu0 %1855
        %v1858 = vsel %vm630, %v1570, %v1856
        %v1859 = vpack.c.bf16 %v1858, %v1858
        %s1860 = scalar_lea.vmem [#allocation6], 16
        %v1861 = vld [vmem:[%s1860] sm:$0xf]
        %v1862 = vld [vmem:[%s1860 + $0x4] sm:$0xf]
        %v1863 = vld [vmem:[%s1860 + $0x8] sm:$0xf]
        %v1864 = vld [vmem:[%s1860 + $0xc] sm:$0xf]
        %v1865 = vld [vmem:[%s1297 + $0x2] sm:$0x1]
        %v1866 = vlaneseq
        %v1867 = vshrl.u32 %v1866, 7
        %v1868 = vsub.s32 0, %v1867
        %v1869 = vrot.slane %v1865, %v1868
        %v1874 = vunpack.c.l.b16 %v1861
        %v1875 = vunpack.c.l.b16 %v1862
        %v1876 = vunpack.c.l.b16 %v1863
        %v1877 = vunpack.c.l.b16 %v1864
        %v1878 = vpack.c.b16 %v1875, %v1874
        %v1879 = vpack.c.b16 %v1877, %v1876
        %v1883 = vsel %vm417, %v1859, 0
        %1885 = vmatprep.subr.bf16.mxu0 0
        %1886 = vmatpush1.bf16.msra.mxu0 0
        %1887 = vmatprep.subr.bf16.mxu0 0
        %1888 = vmatpush1.bf16.msra.mxu0 0
        %1889 = vmatprep.subr.bf16.mxu0 0
        %1890 = vmatpush1.bf16.msra.mxu0 0
        %1891 = vmatprep.subr.bf16.mxu0 0
        %1892 = vmatpush1.bf16.msra.mxu0 0
        %1893 = vmatprep.subr.bf16.mxu0 0
        %1894 = vmatpush1.bf16.msra.mxu0 0
        %1895 = vmatprep.subr.bf16.mxu0 0
        %1896 = vmatpush1.bf16.msra.mxu0 0
        %1897 = vmatprep.subr.bf16.mxu0 0
        %1898 = vmatpush1.bf16.msra.mxu0 %v1879
        %1899 = vmatprep.subr.bf16.mxu0 0
        %1900 = vmatpush1.bf16.msra.mxu0 %v1878
        %1901 = vmatprep.subr.bf16.mxu0 0
        %1902 = vmatpush2.bf16.msra.mxu0 0
        %1903 = vmatprep.subr.bf16.mxu0 0
        %1904 = vmatpush2.bf16.msra.mxu0 0
        %1905 = vmatprep.subr.bf16.mxu0 0
        %1906 = vmatpush2.bf16.msra.mxu0 0
        %1907 = vmatprep.subr.bf16.mxu0 0
        %1908 = vmatpush2.bf16.msra.mxu0 0
        %1909 = vmatprep.subr.bf16.mxu0 0
        %1910 = vmatpush2.bf16.msra.mxu0 0
        %1911 = vmatprep.subr.bf16.mxu0 0
        %1912 = vmatpush2.bf16.msra.mxu0 0
        %1913 = vmatprep.subr.bf16.mxu0 0
        %1914 = vmatpush2.bf16.msra.mxu0 0
        %1915 = vmatprep.subr.bf16.mxu0 0
        %1916 = vmatpush2.bf16.msra.mxu0 0
        %1917 = vmatprep.mubr.bf16.mxu0 0
        %1918 = vmatmul.mubr.bf16.gmra.mxu0 %v1883
        %v1919 = vpop.f32.mrf.mxu0
        %v1920 = vadd.f32 %v1869, %v1919
        %v1921 = vpop.f32.mrf.mxu0
        %v1922 = vpop.f32.mrf.mxu0
        %v1923 = vpop.f32.mrf.mxu0
        %1924 = vdwg.mxu0
        %v1925 = vadd.f32 %v1290, %v1920
        %v1926 = vld [vmem:[%s1297 + $0x3] sm:$0x1]
        %v1927 = vld [vmem:[%s1297 + $0x4] sm:$0x1]
        %v1928 = vsel %vm417, %v1925, 0.0
        %1929 = vadd.xlane.f32.xlu0 %v1928
        %v1930 = vpop.xlane.xlu0 %1929
        %v1931 = vmul.f32 %v1930, %v421
        %v1932 = vsub.f32 %v1925, %v1931
        %v1933 = vmul.f32 %v1932, %v1932
        %v1934 = vsel %vm417, %v1933, 0.0
        %1935 = vadd.xlane.f32.xlu0 %v1934
        %v1936 = vpop.xlane.xlu0 %1935
        %v1937 = vmul.f32 %v1936, %v421
        %v1938 = vadd.f32 %v1937, 1e-12
        %v1939 = vrsqrt.pop %v1938
        %v1940 = vmul.f32 %v1932, %v1939
        %v1941 = vlaneseq
        %v1942 = vshrl.u32 %v1941, 7
        %v1943 = vsub.s32 0, %v1942
        %v1944 = vrot.slane %v1926, %v1943
        %v1945 = vmul.f32 %v1940, %v1944
        %v1946 = vlaneseq
        %v1947 = vshrl.u32 %v1946, 7
        %v1948 = vsub.s32 0, %v1947
        %v1949 = vrot.slane %v1927, %v1948
        %v1950 = vadd.f32 %v1945, %v1949
        %v1951 = vpack.c.bf16 %v1950, %v1950
        %s1952 = scalar_lea.vmem [#allocation7], 16
        %v1953 = vld [vmem:[%s1952] sm:$0xf]
        %v1954 = vld [vmem:[%s1952 + $0x4] sm:$0xf]
        %v1955 = vld [vmem:[%s1952 + $0x8] sm:$0xf]
        %v1956 = vld [vmem:[%s1952 + $0xc] sm:$0xf]
        %v1957 = vld [vmem:[%s1297 + $0x5] sm:$0x1]
        %v1958 = vlaneseq
        %v1959 = vshrl.u32 %v1958, 7
        %v1960 = vsub.s32 0, %v1959
        %v1961 = vrot.slane %v1957, %v1960
        %v1966 = vunpack.c.l.b16 %v1953
        %v1967 = vunpack.c.l.b16 %v1954
        %v1968 = vunpack.c.l.b16 %v1955
        %v1969 = vunpack.c.l.b16 %v1956
        %v1970 = vpack.c.b16 %v1967, %v1966
        %v1971 = vpack.c.b16 %v1969, %v1968
        %v1975 = vsel %vm417, %v1951, 0
        %1977 = vmatprep.subr.bf16.mxu0 0
        %1978 = vmatpush1.bf16.msra.mxu0 0
        %1979 = vmatprep.subr.bf16.mxu0 0
        %1980 = vmatpush1.bf16.msra.mxu0 0
        %1981 = vmatprep.subr.bf16.mxu0 0
        %1982 = vmatpush1.bf16.msra.mxu0 0
        %1983 = vmatprep.subr.bf16.mxu0 0
        %1984 = vmatpush1.bf16.msra.mxu0 0
        %1985 = vmatprep.subr.bf16.mxu0 0
        %1986 = vmatpush1.bf16.msra.mxu0 0
        %1987 = vmatprep.subr.bf16.mxu0 0
        %1988 = vmatpush1.bf16.msra.mxu0 0
        %1989 = vmatprep.subr.bf16.mxu0 0
        %1990 = vmatpush1.bf16.msra.mxu0 %v1971
        %1991 = vmatprep.subr.bf16.mxu0 0
        %1992 = vmatpush1.bf16.msra.mxu0 %v1970
        %1993 = vmatprep.subr.bf16.mxu0 0
        %1994 = vmatpush2.bf16.msra.mxu0 0
        %1995 = vmatprep.subr.bf16.mxu0 0
        %1996 = vmatpush2.bf16.msra.mxu0 0
        %1997 = vmatprep.subr.bf16.mxu0 0
        %1998 = vmatpush2.bf16.msra.mxu0 0
        %1999 = vmatprep.subr.bf16.mxu0 0
        %2000 = vmatpush2.bf16.msra.mxu0 0
        %2001 = vmatprep.subr.bf16.mxu0 0
        %2002 = vmatpush2.bf16.msra.mxu0 0
        %2003 = vmatprep.subr.bf16.mxu0 0
        %2004 = vmatpush2.bf16.msra.mxu0 0
        %2005 = vmatprep.subr.bf16.mxu0 0
        %2006 = vmatpush2.bf16.msra.mxu0 0
        %2007 = vmatprep.subr.bf16.mxu0 0
        %2008 = vmatpush2.bf16.msra.mxu0 0
        %2009 = vmatprep.mubr.bf16.mxu0 0
        %2010 = vmatmul.mubr.bf16.gmra.mxu0 %v1975
        %v2011 = vpop.f32.mrf.mxu0
        %v2012 = vadd.f32 %v1961, %v2011
        %v2013 = vpop.f32.mrf.mxu0
        %v2014 = vpop.f32.mrf.mxu0
        %v2015 = vpop.f32.mrf.mxu0
        %2016 = vdwg.mxu0
        %v2017 = vmul.f32 %v2012, 0.5
        %v2018 = vmul.f32 %v2012, 0.044715
        %v2019 = vmul.f32 %v2018, %v2012
        %v2020 = vmul.f32 %v2019, %v2012
        %v2021 = vadd.f32 %v2012, %v2020
        %v2022 = vmul.f32 %v2021, 0.7978846
        %v2023 = vtanh.pop %v2022
        %v2024 = vadd.f32 %v2023, 1.0
        %v2025 = vmul.f32 %v2017, %v2024
        %v2026 = vpack.c.bf16 %v2025, %v2025
        %s2027 = scalar_lea.vmem [#allocation9], 32
        %v2028 = vld [vmem:[%s2027] sm:$0xf]
        %v2029 = vld [vmem:[%s2027 + $0x4] sm:$0xf]
        %v2030 = vld [vmem:[%s2027 + $0x8] sm:$0xf]
        %v2031 = vld [vmem:[%s2027 + $0xc] sm:$0xf]
        %v2032 = vld [vmem:[%s2027 + $0x10] sm:$0xf]
        %v2033 = vld [vmem:[%s2027 + $0x14] sm:$0xf]
        %v2034 = vld [vmem:[%s2027 + $0x18] sm:$0xf]
        %v2035 = vld [vmem:[%s2027 + $0x1c] sm:$0xf]
        %v2036 = vld [vmem:[%s1297 + $0x6] sm:$0x1]
        %v2037 = vlaneseq
        %v2038 = vshrl.u32 %v2037, 7
        %v2039 = vsub.s32 0, %v2038
        %v2040 = vrot.slane %v2036, %v2039
        %v2049 = vunpack.c.l.b16 %v2028
        %v2050 = vunpack.c.l.b16 %v2029
        %v2051 = vunpack.c.l.b16 %v2030
        %v2052 = vunpack.c.l.b16 %v2031
        %v2053 = vunpack.c.l.b16 %v2032
        %v2054 = vunpack.c.l.b16 %v2033
        %v2055 = vunpack.c.l.b16 %v2034
        %v2056 = vunpack.c.l.b16 %v2035
        %v2057 = vpack.c.b16 %v2050, %v2049
        %v2058 = vpack.c.b16 %v2052, %v2051
        %v2059 = vpack.c.b16 %v2054, %v2053
        %v2060 = vpack.c.b16 %v2056, %v2055
        %v2066 = vsel %vm1221, %v2026, 0
        %2068 = vmatprep.subr.bf16.mxu0 0
        %2069 = vmatpush1.bf16.msra.mxu0 0
        %2070 = vmatprep.subr.bf16.mxu0 0
        %2071 = vmatpush1.bf16.msra.mxu0 0
        %2072 = vmatprep.subr.bf16.mxu0 0
        %2073 = vmatpush1.bf16.msra.mxu0 0
        %2074 = vmatprep.subr.bf16.mxu0 0
        %2075 = vmatpush1.bf16.msra.mxu0 0
        %2076 = vmatprep.subr.bf16.mxu0 0
        %2077 = vmatpush1.bf16.msra.mxu0 %v2060
        %2078 = vmatprep.subr.bf16.mxu0 0
        %2079 = vmatpush1.bf16.msra.mxu0 %v2059
        %2080 = vmatprep.subr.bf16.mxu0 0
        %2081 = vmatpush1.bf16.msra.mxu0 %v2058
        %2082 = vmatprep.subr.bf16.mxu0 0
        %2083 = vmatpush1.bf16.msra.mxu0 %v2057
        %2084 = vmatprep.subr.bf16.mxu0 0
        %2085 = vmatpush2.bf16.msra.mxu0 0
        %2086 = vmatprep.subr.bf16.mxu0 0
        %2087 = vmatpush2.bf16.msra.mxu0 0
        %2088 = vmatprep.subr.bf16.mxu0 0
        %2089 = vmatpush2.bf16.msra.mxu0 0
        %2090 = vmatprep.subr.bf16.mxu0 0
        %2091 = vmatpush2.bf16.msra.mxu0 0
        %2092 = vmatprep.subr.bf16.mxu0 0
        %2093 = vmatpush2.bf16.msra.mxu0 0
        %2094 = vmatprep.subr.bf16.mxu0 0
        %2095 = vmatpush2.bf16.msra.mxu0 0
        %2096 = vmatprep.subr.bf16.mxu0 0
        %2097 = vmatpush2.bf16.msra.mxu0 0
        %2098 = vmatprep.subr.bf16.mxu0 0
        %2099 = vmatpush2.bf16.msra.mxu0 0
        %2100 = vmatprep.mubr.bf16.mxu0 0
        %2101 = vmatmul.mubr.bf16.gmra.mxu0 %v2066
        %v2102 = vpop.f32.mrf.mxu0
        %v2103 = vadd.f32 %v2040, %v2102
        %v2104 = vpop.f32.mrf.mxu0
        %v2105 = vpop.f32.mrf.mxu0
        %v2106 = vpop.f32.mrf.mxu0
        %2107 = vdwg.mxu0
        %v2108 = vadd.f32 %v1950, %v2103
        %v2109 = vld [vmem:[%s1297 + $0x7] sm:$0x1]
        %v2110 = vld [vmem:[%s1297 + $0x8] sm:$0x1]
        %v2111 = vsel %vm417, %v2108, 0.0
        %2112 = vadd.xlane.f32.xlu0 %v2111
        %v2113 = vpop.xlane.xlu0 %2112
        %v2114 = vmul.f32 %v2113, %v421
        %v2115 = vsub.f32 %v2108, %v2114
        %v2116 = vmul.f32 %v2115, %v2115
        %v2117 = vsel %vm417, %v2116, 0.0
        %2118 = vadd.xlane.f32.xlu0 %v2117
        %v2119 = vpop.xlane.xlu0 %2118
        %v2120 = vmul.f32 %v2119, %v421
        %v2121 = vadd.f32 %v2120, 1e-12
        %v2122 = vrsqrt.pop %v2121
        %v2123 = vmul.f32 %v2115, %v2122
        %v2124 = vlaneseq
        %v2125 = vshrl.u32 %v2124, 7
        %v2126 = vsub.s32 0, %v2125
        %v2127 = vrot.slane %v2109, %v2126
        %v2128 = vmul.f32 %v2123, %v2127
        %v2129 = vlaneseq
        %v2130 = vshrl.u32 %v2129, 7
        %v2131 = vsub.s32 0, %v2130
        %v2132 = vrot.slane %v2110, %v2131
        %v2133 = vadd.f32 %v2128, %v2132
        %v2134 = vpack.c.bf16 %v2133, %v2133
        %v2135 = vld [vmem:[%s8] sm:$0xf]
        %v2136 = vld [vmem:[%s8 + $0x8] sm:$0xf]
        %v2137 = vld [vmem:[%s8 + $0x10] sm:$0xf]
        %v2138 = vld [vmem:[%s8 + $0x18] sm:$0xf]
        %v2139 = vld [vmem:[#allocation4 + $0x2] sm:$0x1]
        %v2144 = vunpack.c.l.b16 %v2135
        %v2145 = vunpack.c.l.b16 %v2136
        %v2146 = vunpack.c.l.b16 %v2137
        %v2147 = vunpack.c.l.b16 %v2138
        %v2148 = vpack.c.b16 %v2145, %v2144
        %v2149 = vpack.c.b16 %v2147, %v2146
        %v2153 = vsel %vm417, %v2134, 0
        %2155 = vmatprep.subr.bf16.mxu0 0
        %2156 = vmatpush1.bf16.msra.mxu0 0
        %2157 = vmatprep.subr.bf16.mxu0 0
        %2158 = vmatpush1.bf16.msra.mxu0 0
        %2159 = vmatprep.subr.bf16.mxu0 0
        %2160 = vmatpush1.bf16.msra.mxu0 0
        %2161 = vmatprep.subr.bf16.mxu0 0
        %2162 = vmatpush1.bf16.msra.mxu0 0
        %2163 = vmatprep.subr.bf16.mxu0 0
        %2164 = vmatpush1.bf16.msra.mxu0 0
        %2165 = vmatprep.subr.bf16.mxu0 0
        %2166 = vmatpush1.bf16.msra.mxu0 0
        %2167 = vmatprep.subr.bf16.mxu0 0
        %2168 = vmatpush1.bf16.msra.mxu0 %v2149
        %2169 = vmatprep.subr.bf16.mxu0 0
        %2170 = vmatpush1.bf16.msra.mxu0 %v2148
        %2171 = vmatprep.subr.bf16.mxu0 0
        %2172 = vmatpush2.bf16.msra.mxu0 0
        %2173 = vmatprep.subr.bf16.mxu0 0
        %2174 = vmatpush2.bf16.msra.mxu0 0
        %2175 = vmatprep.subr.bf16.mxu0 0
        %2176 = vmatpush2.bf16.msra.mxu0 0
        %2177 = vmatprep.subr.bf16.mxu0 0
        %2178 = vmatpush2.bf16.msra.mxu0 0
        %2179 = vmatprep.subr.bf16.mxu0 0
        %2180 = vmatpush2.bf16.msra.mxu0 0
        %2181 = vmatprep.subr.bf16.mxu0 0
        %2182 = vmatpush2.bf16.msra.mxu0 0
        %2183 = vmatprep.subr.bf16.mxu0 0
        %2184 = vmatpush2.bf16.msra.mxu0 0
        %2185 = vmatprep.subr.bf16.mxu0 0
        %2186 = vmatpush2.bf16.msra.mxu0 0
        %2187 = vmatprep.mubr.bf16.mxu0 0
        %2188 = vmatmul.mubr.bf16.gmra.mxu0 %v2153
        %v2189 = vpop.f32.mrf.mxu0
        %v2190 = vadd.f32 %v2139, %v2189
        %v2191 = vpop.f32.mrf.mxu0
        %v2192 = vpop.f32.mrf.mxu0
        %v2193 = vpop.f32.mrf.mxu0
        %2194 = vdwg.mxu0
        %v2195 = vtanh.pop %v2190
        %v2196 = vpack.c.bf16 %v2195, %v2195
        %v2197 = vld [vmem:[%s8 + $0x4] sm:$0xf]
        %v2198 = vld [vmem:[%s8 + $0xc] sm:$0xf]
        %v2199 = vld [vmem:[%s8 + $0x14] sm:$0xf]
        %v2200 = vld [vmem:[%s8 + $0x1c] sm:$0xf]
        %v2201 = vld [vmem:[#allocation4 + $0x3] sm:$0x1]
        %v2206 = vunpack.c.l.b16 %v2197
        %v2207 = vunpack.c.l.b16 %v2198
        %v2208 = vunpack.c.l.b16 %v2199
        %v2209 = vunpack.c.l.b16 %v2200
        %v2210 = vpack.c.b16 %v2207, %v2206
        %v2211 = vpack.c.b16 %v2209, %v2208
        %v2215 = vsel %vm417, %v2196, 0
        %2217 = vmatprep.subr.bf16.mxu0 0
        %2218 = vmatpush1.bf16.msra.mxu0 0
        %2219 = vmatprep.subr.bf16.mxu0 0
        %2220 = vmatpush1.bf16.msra.mxu0 0
        %2221 = vmatprep.subr.bf16.mxu0 0
        %2222 = vmatpush1.bf16.msra.mxu0 0
        %2223 = vmatprep.subr.bf16.mxu0 0
        %2224 = vmatpush1.bf16.msra.mxu0 0
        %2225 = vmatprep.subr.bf16.mxu0 0
        %2226 = vmatpush1.bf16.msra.mxu0 0
        %2227 = vmatprep.subr.bf16.mxu0 0
        %2228 = vmatpush1.bf16.msra.mxu0 0
        %2229 = vmatprep.subr.bf16.mxu0 0
        %2230 = vmatpush1.bf16.msra.mxu0 %v2211
        %2231 = vmatprep.subr.bf16.mxu0 0
        %2232 = vmatpush1.bf16.msra.mxu0 %v2210
        %2233 = vmatprep.subr.bf16.mxu0 0
        %2234 = vmatpush2.bf16.msra.mxu0 0
        %2235 = vmatprep.subr.bf16.mxu0 0
        %2236 = vmatpush2.bf16.msra.mxu0 0
        %2237 = vmatprep.subr.bf16.mxu0 0
        %2238 = vmatpush2.bf16.msra.mxu0 0
        %2239 = vmatprep.subr.bf16.mxu0 0
        %2240 = vmatpush2.bf16.msra.mxu0 0
        %2241 = vmatprep.subr.bf16.mxu0 0
        %2242 = vmatpush2.bf16.msra.mxu0 0
        %2243 = vmatprep.subr.bf16.mxu0 0
        %2244 = vmatpush2.bf16.msra.mxu0 0
        %2245 = vmatprep.subr.bf16.mxu0 0
        %2246 = vmatpush2.bf16.msra.mxu0 0
        %2247 = vmatprep.subr.bf16.mxu0 0
        %2248 = vmatpush2.bf16.msra.mxu0 0
        %2249 = vmatprep.mubr.bf16.mxu0 0
        %2250 = vmatmul.mubr.bf16.gmra.mxu0 %v2215
        %v2251 = vpop.f32.mrf.mxu0
        %v2252 = vadd.f32 %v2201, %v2251
        %v2253 = vpop.f32.mrf.mxu0
        %v2254 = vpop.f32.mrf.mxu0
        %v2255 = vpop.f32.mrf.mxu0
        %2256 = vdwg.mxu0
        %v2257 = vlaneseq
        %v2258 = vshrl.u32 %v2257, 7
        %v2259 = vsub.s32 0, %v2258
        %v2260 = vrot.slane %v2252, %v2259
        %2261 = vst [vmem:[%s412] sm:$0xff] %v2260
        %p2262 = scmp.lt.s32.totalorder %s23, 1
        %s2263 = scalar_select %p2262, %s23, 1
        %s2264 = smul.addr %s2263, 8
        %s2265 = scalar_lea.vmem %s9, %s2264
        // Predicated region
        $region77: #{_lambda_.1} parent=55 // pred_check
          %p2266 = pneg %p240
        $region78: #{_lambda_.1} parent=55 // pred_check_branch
          %2268 = sbr.rel (%p2266) target = $region80
        $region79: #{_lambda_.1} parent=55 // pred_region
          _
        $region80: #{_lambda_.1} parent=55 // pred_fallthru
          _
      $region56: #{_lambda_.1} parent=5 // pred_fallthru
        _
      %p2269 = scmp.le.s32.totalorder 2, %s18
      // Predicated region
      $region81: #{_lambda_.1} parent=5 // pred_check
        %p2270 = pneg %p2269
      $region82: #{_lambda_.1} parent=5 // pred_check_branch
        %2272 = sbr.rel (%p2270) target = $region84
      $region83: #{_lambda_.1} parent=5 // pred_region
        %s2273 = ssub.s32 %s18, 2
        // Predicated region
        $region85: #{_lambda_.1} parent=83 // pred_check
          %p2274 = pneg %p246
        $region86: #{_lambda_.1} parent=83 // pred_check_branch
          %2276 = sbr.rel (%p2274) target = $region88
        $region87: #{_lambda_.1} parent=83 // pred_region
          %p2277 = scmp.lt.s32.totalorder %s24, 1
          %s2278 = scalar_select %p2277, %s24, 1
          %s2279 = smul.addr %s2278, 8
          %s2280 = scalar_lea.vmem %s9, %s2279
        $region88: #{_lambda_.1} parent=83 // pred_fallthru
          _
      $region84: #{_lambda_.1} parent=5 // pred_fallthru
        _
    $region6: #{_lambda_.1} parent=1 // loop_footer
      %s22 = sadd.s32 1, %s18
    $region7: #{_lambda_.1} parent=1 // loop_footer_branch
      %17 = sbr.rel target = $region3
    $region8: #{_lambda_.1} parent=1 // loop_exit
      _
    %2281 = vsyncpa [#allocation3], 1
    %s2282 = scalar_lea.sflag [#allocation3], 1
    %2283 = vsyncpa %s2282, 1
    %2284 = vsyncpa [#allocation5], 1
    %2285 = vsyncpa [#allocation8], 1

</llo_original>
